<compile_context>
chip_gen: v5e
topology: v5e:2x2
jax: 0.10.0
libtpu: 0.0.40
codegen_flags: <defaults>
</compile_context>

<pallas_src>
import functools

import jax
import jax.numpy as jnp
from jax import lax
from jax.experimental import pallas as pl
from jax.experimental.pallas import tpu as pltpu

_PAD = 8  # field row r lives at scratch row (_PAD - 1) + r  -> aligned sweep store


def _round_up(a, m):
    return ((a + m - 1) // m) * m


def jacobi_kernel(f0_ref, o_ref, buf_ref, *, nt, w_valid):
    H, Wp = f0_ref.shape
    base = _PAD - 1          # scratch row of field row 0
    n_int = H - 2            # number of interior rows

    # One-time: place the initial field at scratch rows [base, base + H).
    buf_ref[pl.ds(base, H), :] = f0_ref[...]

    # (1, Wp) column coefficient: 0.25 on interior columns, 0 on the boundary
    # columns and on padded lanes.  Broadcast over sublanes in the multiply.
    cols = lax.broadcasted_iota(jnp.int32, (1, Wp), 1)
    coef_row = jnp.where((cols > 0) & (cols < w_valid - 1),
                         jnp.float32(0.25), jnp.float32(0.0))

    def sweep():
        cur = buf_ref[pl.ds(_PAD, n_int), :]          # field rows 1 .. H-2 (aligned)
        up = buf_ref[pl.ds(_PAD - 1, n_int), :]       # field rows 0 .. H-3
        down = buf_ref[pl.ds(_PAD + 1, n_int), :]     # field rows 2 .. H-1
        right = pltpu.roll(cur, Wp - 1, 1)            # x[i, j+1] (wrap lands in masked lanes)
        left = pltpu.roll(cur, 1, 1)                  # x[i, j-1] (wrap lands in masked lanes)
        buf_ref[pl.ds(_PAD, n_int), :] = ((right + left) + (up + down)) * coef_row

    if nt >= 1:
        # First sweep reads the un-zeroed boundary of the initial field.
        sweep()
        # Zero the two boundary rows once; they are never rewritten afterwards,
        # so they stay zero for all remaining sweeps (and in the output).
        zrow = jnp.zeros((1, Wp), jnp.float32)
        buf_ref[pl.ds(base, 1), :] = zrow
        buf_ref[pl.ds(base + H - 1, 1), :] = zrow

        rem = nt - 1
        if nt <= 32:
            # Small nt: fully unroll at trace time.
            for _ in range(rem):
                sweep()
        else:
            unroll = 4

            def body(t, carry):
                for _ in range(unroll):
                    sweep()
                return carry

            lax.fori_loop(0, rem // unroll, body, 0)
            for _ in range(rem % unroll):
                sweep()

    o_ref[...] = buf_ref[pl.ds(base, H), :]


def jacobi_machine(X, Y, nt=100):
    H, W = X.shape
    assert H >= 3 and W >= 3, "JacobiMachine kernel expects at least a 3x3 grid"

    Wp = max(128, _round_up(W, 128))                  # lane-dense last dim
    buf_rows = _round_up(H + _PAD - 1, 8)

    # Precompute the initial field in the wrapper (single HxWp kernel input);
    # zero-padded lanes are exactly 0.
    X32 = X.astype(jnp.float32)
    Y32 = Y.astype(jnp.float32)
    f0 = jnp.exp(-50.0 * ((X32 - 0.5) ** 2 + (Y32 - 0.5) ** 2))
    f0 = jnp.pad(f0, ((0, 0), (0, Wp - W)))

    # Per-generation VMEM limit: ~85% of physical capacity (headroom for Mosaic
    # internal scratch).  Conservative fallback if hardware info is unavailable.
    try:
        cap = int(pltpu.get_tpu_info().vmem_capacity_bytes)
    except Exception:
        cap = 64 * 1024 * 1024
    vmem_limit = int(cap * 0.85)

    kernel = functools.partial(jacobi_kernel, nt=int(nt), w_valid=W)

    out = pl.pallas_call(
        kernel,
        out_shape=jax.ShapeDtypeStruct((H, Wp), jnp.float32),
        in_specs=[pl.BlockSpec((H, Wp), lambda: (0, 0))],
        out_specs=pl.BlockSpec((H, Wp), lambda: (0, 0)),
        scratch_shapes=[pltpu.VMEM((buf_rows, Wp), jnp.float32)],
        compiler_params=pltpu.CompilerParams(vmem_limit_bytes=vmem_limit),
    )(f0)
    return out[:, :W]


def jacobi_reference(X, Y, nt=100):
    """Pure-JAX literal transcription of the PyTorch forward."""
    x = jnp.exp(-50.0 * ((X - 0.5) ** 2 + (Y - 0.5) ** 2))
    mask = jnp.ones_like(x)
    mask = mask.at[:, 0].set(0).at[:, -1].set(0).at[0, :].set(0).at[-1, :].set(0)
    for _ in range(nt):
        x_prev = x
        upd = 0.25 * (
            (x_prev[1:-1, 2:] + x_prev[1:-1, :-2])
            + (x_prev[2:, 1:-1] + x_prev[:-2, 1:-1])
        )
        x_next = x_prev.at[1:-1, 1:-1].set(upd)
        x_next = x_next * mask
        x = x_next
    return x


if __name__ == "__main__":
    # Small grid consistent with the module (square meshgrid over [0, 1]).
    nx = 32
    nt = 20

    key = jax.random.PRNGKey(0)  # deterministic setup (grid itself is analytic)
    lin = jnp.linspace(0.0, 1.0, nx, dtype=jnp.float32)
    X, Y = jnp.meshgrid(lin, lin, indexing="ij")

    # Fully-unrolled path (nt <= 32).
    out = jacobi_machine(X, Y, nt=nt)
    out = jax.block_until_ready(out)
    ref = jacobi_reference(X, Y, nt=nt)
    assert out.shape == (nx, nx) and out.dtype == jnp.float32
    assert jnp.allclose(out, ref, atol=1e-6, rtol=1e-6), "mismatch vs reference (nt=20)"

    # fori_loop path (nt > 32).
    nt_big = 40
    out_big = jax.block_until_ready(jacobi_machine(X, Y, nt=nt_big))
    ref_big = jacobi_reference(X, Y, nt=nt_big)
    assert jnp.allclose(out_big, ref_big, atol=1e-6, rtol=1e-6), "mismatch vs reference (nt=40)"

    print("KERNEL_OK")
</pallas_src>

<mosaic_0001>
module attributes {stable_mosaic.version = 11 : i64} {
  func.func @jacobi_kernel(%arg0: memref<32x128xf32, #tpu.memory_space<vmem>>, %arg1: memref<32x128xf32, #tpu.memory_space<vmem>>, %arg2: memref<40x128xf32, #tpu.memory_space<vmem>>) attributes {dimension_semantics = [], scalar_prefetch = 0 : i64, scratch_operands = 1 : i64, tpu.core_type = #tpu.core_type<tc>} {
    %c0 = arith.constant 0 : index
    %c0_0 = arith.constant 0 : index
    %0 = vector.load %arg0[%c0, %c0_0] : memref<32x128xf32, #tpu.memory_space<vmem>>, vector<32x128xf32>
    %c7 = arith.constant 7 : index
    %c0_1 = arith.constant 0 : index
    %1 = vector.load %arg2[%c7, %c0_1] : memref<40x128xf32, #tpu.memory_space<vmem>>, vector<32x128xf32>
    tpu.vector_store %arg2[%c7, %c0_1], %0 {strides = array<i32>} : memref<40x128xf32, #tpu.memory_space<vmem>>, vector<32x128xf32>,
    %2 = tpu.iota {dimensions = array<i32: 1>} : vector<1x128xi32>
    %c0_i32 = arith.constant 0 : i32
    %3 = vector.broadcast %c0_i32 : i32 to vector<1x128xi32>
    %4 = arith.cmpi sgt, %2, %3 : vector<1x128xi32>
    %c31_i32 = arith.constant 31 : i32
    %5 = vector.broadcast %c31_i32 : i32 to vector<1x128xi32>
    %6 = arith.cmpi slt, %2, %5 : vector<1x128xi32>
    %7 = arith.andi %4, %6 : vector<1x128xi1>
    %cst = arith.constant 2.500000e-01 : f32
    %cst_2 = arith.constant 0.000000e+00 : f32
    %8 = vector.broadcast %cst : f32 to vector<1x128xf32>
    %9 = vector.broadcast %cst_2 : f32 to vector<1x128xf32>
    %10 = arith.select %7, %8, %9 : vector<1x128xi1>, vector<1x128xf32>
    %c8 = arith.constant 8 : index
    %c0_3 = arith.constant 0 : index
    %11 = vector.load %arg2[%c8, %c0_3] : memref<40x128xf32, #tpu.memory_space<vmem>>, vector<30x128xf32>
    %c7_4 = arith.constant 7 : index
    %c0_5 = arith.constant 0 : index
    %12 = vector.load %arg2[%c7_4, %c0_5] : memref<40x128xf32, #tpu.memory_space<vmem>>, vector<30x128xf32>
    %c9 = arith.constant 9 : index
    %c0_6 = arith.constant 0 : index
    %13 = vector.load %arg2[%c9, %c0_6] : memref<40x128xf32, #tpu.memory_space<vmem>>, vector<30x128xf32>
    %c127_i32 = arith.constant 127 : i32
    %14 = tpu.dynamic_rotate %11 by %c127_i32 dim 1 : vector<30x128xf32>, i32 -> vector<30x128xf32>
    %c1_i32 = arith.constant 1 : i32
    %15 = tpu.dynamic_rotate %11 by %c1_i32 dim 1 : vector<30x128xf32>, i32 -> vector<30x128xf32>
    %16 = arith.addf %14, %15 : vector<30x128xf32>
    %17 = arith.addf %12, %13 : vector<30x128xf32>
    %18 = arith.addf %16, %17 : vector<30x128xf32>
    %19 = vector.broadcast %10 : vector<1x128xf32> to vector<30x128xf32>
    %20 = arith.mulf %18, %19 : vector<30x128xf32>
    %c8_7 = arith.constant 8 : index
    %c0_8 = arith.constant 0 : index
    %21 = vector.load %arg2[%c8_7, %c0_8] : memref<40x128xf32, #tpu.memory_space<vmem>>, vector<30x128xf32>
    tpu.vector_store %arg2[%c8_7, %c0_8], %20 {strides = array<i32>} : memref<40x128xf32, #tpu.memory_space<vmem>>, vector<30x128xf32>,
    %cst_9 = arith.constant 0.000000e+00 : f32
    %22 = vector.broadcast %cst_9 : f32 to vector<1x128xf32>
    %c7_10 = arith.constant 7 : index
    %c0_11 = arith.constant 0 : index
    %23 = vector.load %arg2[%c7_10, %c0_11] : memref<40x128xf32, #tpu.memory_space<vmem>>, vector<1x128xf32>
    tpu.vector_store %arg2[%c7_10, %c0_11], %22 {strides = array<i32>} : memref<40x128xf32, #tpu.memory_space<vmem>>, vector<1x128xf32>,
    %c38 = arith.constant 38 : index
    %c0_12 = arith.constant 0 : index
    %24 = vector.load %arg2[%c38, %c0_12] : memref<40x128xf32, #tpu.memory_space<vmem>>, vector<1x128xf32>
    tpu.vector_store %arg2[%c38, %c0_12], %22 {strides = array<i32>} : memref<40x128xf32, #tpu.memory_space<vmem>>, vector<1x128xf32>,
    %c8_13 = arith.constant 8 : index
    %c0_14 = arith.constant 0 : index
    %25 = vector.load %arg2[%c8_13, %c0_14] : memref<40x128xf32, #tpu.memory_space<vmem>>, vector<30x128xf32>
    %c7_15 = arith.constant 7 : index
    %c0_16 = arith.constant 0 : index
    %26 = vector.load %arg2[%c7_15, %c0_16] : memref<40x128xf32, #tpu.memory_space<vmem>>, vector<30x128xf32>
    %c9_17 = arith.constant 9 : index
    %c0_18 = arith.constant 0 : index
    %27 = vector.load %arg2[%c9_17, %c0_18] : memref<40x128xf32, #tpu.memory_space<vmem>>, vector<30x128xf32>
    %c127_i32_19 = arith.constant 127 : i32
    %28 = tpu.dynamic_rotate %25 by %c127_i32_19 dim 1 : vector<30x128xf32>, i32 -> vector<30x128xf32>
    %c1_i32_20 = arith.constant 1 : i32
    %29 = tpu.dynamic_rotate %25 by %c1_i32_20 dim 1 : vector<30x128xf32>, i32 -> vector<30x128xf32>
    %30 = arith.addf %28, %29 : vector<30x128xf32>
    %31 = arith.addf %26, %27 : vector<30x128xf32>
    %32 = arith.addf %30, %31 : vector<30x128xf32>
    %33 = vector.broadcast %10 : vector<1x128xf32> to vector<30x128xf32>
    %34 = arith.mulf %32, %33 : vector<30x128xf32>
    %c8_21 = arith.constant 8 : index
    %c0_22 = arith.constant 0 : index
    %35 = vector.load %arg2[%c8_21, %c0_22] : memref<40x128xf32, #tpu.memory_space<vmem>>, vector<30x128xf32>
    tpu.vector_store %arg2[%c8_21, %c0_22], %34 {strides = array<i32>} : memref<40x128xf32, #tpu.memory_space<vmem>>, vector<30x128xf32>,
    %c8_23 = arith.constant 8 : index
    %c0_24 = arith.constant 0 : index
    %36 = vector.load %arg2[%c8_23, %c0_24] : memref<40x128xf32, #tpu.memory_space<vmem>>, vector<30x128xf32>
    %c7_25 = arith.constant 7 : index
    %c0_26 = arith.constant 0 : index
    %37 = vector.load %arg2[%c7_25, %c0_26] : memref<40x128xf32, #tpu.memory_space<vmem>>, vector<30x128xf32>
    %c9_27 = arith.constant 9 : index
    %c0_28 = arith.constant 0 : index
    %38 = vector.load %arg2[%c9_27, %c0_28] : memref<40x128xf32, #tpu.memory_space<vmem>>, vector<30x128xf32>
    %c127_i32_29 = arith.constant 127 : i32
    %39 = tpu.dynamic_rotate %36 by %c127_i32_29 dim 1 : vector<30x128xf32>, i32 -> vector<30x128xf32>
    %c1_i32_30 = arith.constant 1 : i32
    %40 = tpu.dynamic_rotate %36 by %c1_i32_30 dim 1 : vector<30x128xf32>, i32 -> vector<30x128xf32>
    %41 = arith.addf %39, %40 : vector<30x128xf32>
    %42 = arith.addf %37, %38 : vector<30x128xf32>
    %43 = arith.addf %41, %42 : vector<30x128xf32>
    %44 = vector.broadcast %10 : vector<1x128xf32> to vector<30x128xf32>
    %45 = arith.mulf %43, %44 : vector<30x128xf32>
    %c8_31 = arith.constant 8 : index
    %c0_32 = arith.constant 0 : index
    %46 = vector.load %arg2[%c8_31, %c0_32] : memref<40x128xf32, #tpu.memory_space<vmem>>, vector<30x128xf32>
    tpu.vector_store %arg2[%c8_31, %c0_32], %45 {strides = array<i32>} : memref<40x128xf32, #tpu.memory_space<vmem>>, vector<30x128xf32>,
    %c8_33 = arith.constant 8 : index
    %c0_34 = arith.constant 0 : index
    %47 = vector.load %arg2[%c8_33, %c0_34] : memref<40x128xf32, #tpu.memory_space<vmem>>, vector<30x128xf32>
    %c7_35 = arith.constant 7 : index
    %c0_36 = arith.constant 0 : index
    %48 = vector.load %arg2[%c7_35, %c0_36] : memref<40x128xf32, #tpu.memory_space<vmem>>, vector<30x128xf32>
    %c9_37 = arith.constant 9 : index
    %c0_38 = arith.constant 0 : index
    %49 = vector.load %arg2[%c9_37, %c0_38] : memref<40x128xf32, #tpu.memory_space<vmem>>, vector<30x128xf32>
    %c127_i32_39 = arith.constant 127 : i32
    %50 = tpu.dynamic_rotate %47 by %c127_i32_39 dim 1 : vector<30x128xf32>, i32 -> vector<30x128xf32>
    %c1_i32_40 = arith.constant 1 : i32
    %51 = tpu.dynamic_rotate %47 by %c1_i32_40 dim 1 : vector<30x128xf32>, i32 -> vector<30x128xf32>
    %52 = arith.addf %50, %51 : vector<30x128xf32>
    %53 = arith.addf %48, %49 : vector<30x128xf32>
    %54 = arith.addf %52, %53 : vector<30x128xf32>
    %55 = vector.broadcast %10 : vector<1x128xf32> to vector<30x128xf32>
    %56 = arith.mulf %54, %55 : vector<30x128xf32>
    %c8_41 = arith.constant 8 : index
    %c0_42 = arith.constant 0 : index
    %57 = vector.load %arg2[%c8_41, %c0_42] : memref<40x128xf32, #tpu.memory_space<vmem>>, vector<30x128xf32>
    tpu.vector_store %arg2[%c8_41, %c0_42], %56 {strides = array<i32>} : memref<40x128xf32, #tpu.memory_space<vmem>>, vector<30x128xf32>,
    %c8_43 = arith.constant 8 : index
    %c0_44 = arith.constant 0 : index
    %58 = vector.load %arg2[%c8_43, %c0_44] : memref<40x128xf32, #tpu.memory_space<vmem>>, vector<30x128xf32>
    %c7_45 = arith.constant 7 : index
    %c0_46 = arith.constant 0 : index
    %59 = vector.load %arg2[%c7_45, %c0_46] : memref<40x128xf32, #tpu.memory_space<vmem>>, vector<30x128xf32>
    %c9_47 = arith.constant 9 : index
    %c0_48 = arith.constant 0 : index
    %60 = vector.load %arg2[%c9_47, %c0_48] : memref<40x128xf32, #tpu.memory_space<vmem>>, vector<30x128xf32>
    %c127_i32_49 = arith.constant 127 : i32
    %61 = tpu.dynamic_rotate %58 by %c127_i32_49 dim 1 : vector<30x128xf32>, i32 -> vector<30x128xf32>
    %c1_i32_50 = arith.constant 1 : i32
    %62 = tpu.dynamic_rotate %58 by %c1_i32_50 dim 1 : vector<30x128xf32>, i32 -> vector<30x128xf32>
    %63 = arith.addf %61, %62 : vector<30x128xf32>
    %64 = arith.addf %59, %60 : vector<30x128xf32>
    %65 = arith.addf %63, %64 : vector<30x128xf32>
    %66 = vector.broadcast %10 : vector<1x128xf32> to vector<30x128xf32>
    %67 = arith.mulf %65, %66 : vector<30x128xf32>
    %c8_51 = arith.constant 8 : index
    %c0_52 = arith.constant 0 : index
    %68 = vector.load %arg2[%c8_51, %c0_52] : memref<40x128xf32, #tpu.memory_space<vmem>>, vector<30x128xf32>
    tpu.vector_store %arg2[%c8_51, %c0_52], %67 {strides = array<i32>} : memref<40x128xf32, #tpu.memory_space<vmem>>, vector<30x128xf32>,
    %c8_53 = arith.constant 8 : index
    %c0_54 = arith.constant 0 : index
    %69 = vector.load %arg2[%c8_53, %c0_54] : memref<40x128xf32, #tpu.memory_space<vmem>>, vector<30x128xf32>
    %c7_55 = arith.constant 7 : index
    %c0_56 = arith.constant 0 : index
    %70 = vector.load %arg2[%c7_55, %c0_56] : memref<40x128xf32, #tpu.memory_space<vmem>>, vector<30x128xf32>
    %c9_57 = arith.constant 9 : index
    %c0_58 = arith.constant 0 : index
    %71 = vector.load %arg2[%c9_57, %c0_58] : memref<40x128xf32, #tpu.memory_space<vmem>>, vector<30x128xf32>
    %c127_i32_59 = arith.constant 127 : i32
    %72 = tpu.dynamic_rotate %69 by %c127_i32_59 dim 1 : vector<30x128xf32>, i32 -> vector<30x128xf32>
    %c1_i32_60 = arith.constant 1 : i32
    %73 = tpu.dynamic_rotate %69 by %c1_i32_60 dim 1 : vector<30x128xf32>, i32 -> vector<30x128xf32>
    %74 = arith.addf %72, %73 : vector<30x128xf32>
    %75 = arith.addf %70, %71 : vector<30x128xf32>
    %76 = arith.addf %74, %75 : vector<30x128xf32>
    %77 = vector.broadcast %10 : vector<1x128xf32> to vector<30x128xf32>
    %78 = arith.mulf %76, %77 : vector<30x128xf32>
    %c8_61 = arith.constant 8 : index
    %c0_62 = arith.constant 0 : index
    %79 = vector.load %arg2[%c8_61, %c0_62] : memref<40x128xf32, #tpu.memory_space<vmem>>, vector<30x128xf32>
    tpu.vector_store %arg2[%c8_61, %c0_62], %78 {strides = array<i32>} : memref<40x128xf32, #tpu.memory_space<vmem>>, vector<30x128xf32>,
    %c8_63 = arith.constant 8 : index
    %c0_64 = arith.constant 0 : index
    %80 = vector.load %arg2[%c8_63, %c0_64] : memref<40x128xf32, #tpu.memory_space<vmem>>, vector<30x128xf32>
    %c7_65 = arith.constant 7 : index
    %c0_66 = arith.constant 0 : index
    %81 = vector.load %arg2[%c7_65, %c0_66] : memref<40x128xf32, #tpu.memory_space<vmem>>, vector<30x128xf32>
    %c9_67 = arith.constant 9 : index
    %c0_68 = arith.constant 0 : index
    %82 = vector.load %arg2[%c9_67, %c0_68] : memref<40x128xf32, #tpu.memory_space<vmem>>, vector<30x128xf32>
    %c127_i32_69 = arith.constant 127 : i32
    %83 = tpu.dynamic_rotate %80 by %c127_i32_69 dim 1 : vector<30x128xf32>, i32 -> vector<30x128xf32>
    %c1_i32_70 = arith.constant 1 : i32
    %84 = tpu.dynamic_rotate %80 by %c1_i32_70 dim 1 : vector<30x128xf32>, i32 -> vector<30x128xf32>
    %85 = arith.addf %83, %84 : vector<30x128xf32>
    %86 = arith.addf %81, %82 : vector<30x128xf32>
    %87 = arith.addf %85, %86 : vector<30x128xf32>
    %88 = vector.broadcast %10 : vector<1x128xf32> to vector<30x128xf32>
    %89 = arith.mulf %87, %88 : vector<30x128xf32>
    %c8_71 = arith.constant 8 : index
    %c0_72 = arith.constant 0 : index
    %90 = vector.load %arg2[%c8_71, %c0_72] : memref<40x128xf32, #tpu.memory_space<vmem>>, vector<30x128xf32>
    tpu.vector_store %arg2[%c8_71, %c0_72], %89 {strides = array<i32>} : memref<40x128xf32, #tpu.memory_space<vmem>>, vector<30x128xf32>,
    %c8_73 = arith.constant 8 : index
    %c0_74 = arith.constant 0 : index
    %91 = vector.load %arg2[%c8_73, %c0_74] : memref<40x128xf32, #tpu.memory_space<vmem>>, vector<30x128xf32>
    %c7_75 = arith.constant 7 : index
    %c0_76 = arith.constant 0 : index
    %92 = vector.load %arg2[%c7_75, %c0_76] : memref<40x128xf32, #tpu.memory_space<vmem>>, vector<30x128xf32>
    %c9_77 = arith.constant 9 : index
    %c0_78 = arith.constant 0 : index
    %93 = vector.load %arg2[%c9_77, %c0_78] : memref<40x128xf32, #tpu.memory_space<vmem>>, vector<30x128xf32>
    %c127_i32_79 = arith.constant 127 : i32
    %94 = tpu.dynamic_rotate %91 by %c127_i32_79 dim 1 : vector<30x128xf32>, i32 -> vector<30x128xf32>
    %c1_i32_80 = arith.constant 1 : i32
    %95 = tpu.dynamic_rotate %91 by %c1_i32_80 dim 1 : vector<30x128xf32>, i32 -> vector<30x128xf32>
    %96 = arith.addf %94, %95 : vector<30x128xf32>
    %97 = arith.addf %92, %93 : vector<30x128xf32>
    %98 = arith.addf %96, %97 : vector<30x128xf32>
    %99 = vector.broadcast %10 : vector<1x128xf32> to vector<30x128xf32>
    %100 = arith.mulf %98, %99 : vector<30x128xf32>
    %c8_81 = arith.constant 8 : index
    %c0_82 = arith.constant 0 : index
    %101 = vector.load %arg2[%c8_81, %c0_82] : memref<40x128xf32, #tpu.memory_space<vmem>>, vector<30x128xf32>
    tpu.vector_store %arg2[%c8_81, %c0_82], %100 {strides = array<i32>} : memref<40x128xf32, #tpu.memory_space<vmem>>, vector<30x128xf32>,
    %c8_83 = arith.constant 8 : index
    %c0_84 = arith.constant 0 : index
    %102 = vector.load %arg2[%c8_83, %c0_84] : memref<40x128xf32, #tpu.memory_space<vmem>>, vector<30x128xf32>
    %c7_85 = arith.constant 7 : index
    %c0_86 = arith.constant 0 : index
    %103 = vector.load %arg2[%c7_85, %c0_86] : memref<40x128xf32, #tpu.memory_space<vmem>>, vector<30x128xf32>
    %c9_87 = arith.constant 9 : index
    %c0_88 = arith.constant 0 : index
    %104 = vector.load %arg2[%c9_87, %c0_88] : memref<40x128xf32, #tpu.memory_space<vmem>>, vector<30x128xf32>
    %c127_i32_89 = arith.constant 127 : i32
    %105 = tpu.dynamic_rotate %102 by %c127_i32_89 dim 1 : vector<30x128xf32>, i32 -> vector<30x128xf32>
    %c1_i32_90 = arith.constant 1 : i32
    %106 = tpu.dynamic_rotate %102 by %c1_i32_90 dim 1 : vector<30x128xf32>, i32 -> vector<30x128xf32>
    %107 = arith.addf %105, %106 : vector<30x128xf32>
    %108 = arith.addf %103, %104 : vector<30x128xf32>
    %109 = arith.addf %107, %108 : vector<30x128xf32>
    %110 = vector.broadcast %10 : vector<1x128xf32> to vector<30x128xf32>
    %111 = arith.mulf %109, %110 : vector<30x128xf32>
    %c8_91 = arith.constant 8 : index
    %c0_92 = arith.constant 0 : index
    %112 = vector.load %arg2[%c8_91, %c0_92] : memref<40x128xf32, #tpu.memory_space<vmem>>, vector<30x128xf32>
    tpu.vector_store %arg2[%c8_91, %c0_92], %111 {strides = array<i32>} : memref<40x128xf32, #tpu.memory_space<vmem>>, vector<30x128xf32>,
    %c8_93 = arith.constant 8 : index
    %c0_94 = arith.constant 0 : index
    %113 = vector.load %arg2[%c8_93, %c0_94] : memref<40x128xf32, #tpu.memory_space<vmem>>, vector<30x128xf32>
    %c7_95 = arith.constant 7 : index
    %c0_96 = arith.constant 0 : index
    %114 = vector.load %arg2[%c7_95, %c0_96] : memref<40x128xf32, #tpu.memory_space<vmem>>, vector<30x128xf32>
    %c9_97 = arith.constant 9 : index
    %c0_98 = arith.constant 0 : index
    %115 = vector.load %arg2[%c9_97, %c0_98] : memref<40x128xf32, #tpu.memory_space<vmem>>, vector<30x128xf32>
    %c127_i32_99 = arith.constant 127 : i32
    %116 = tpu.dynamic_rotate %113 by %c127_i32_99 dim 1 : vector<30x128xf32>, i32 -> vector<30x128xf32>
    %c1_i32_100 = arith.constant 1 : i32
    %117 = tpu.dynamic_rotate %113 by %c1_i32_100 dim 1 : vector<30x128xf32>, i32 -> vector<30x128xf32>
    %118 = arith.addf %116, %117 : vector<30x128xf32>
    %119 = arith.addf %114, %115 : vector<30x128xf32>
    %120 = arith.addf %118, %119 : vector<30x128xf32>
    %121 = vector.broadcast %10 : vector<1x128xf32> to vector<30x128xf32>
    %122 = arith.mulf %120, %121 : vector<30x128xf32>
    %c8_101 = arith.constant 8 : index
    %c0_102 = arith.constant 0 : index
    %123 = vector.load %arg2[%c8_101, %c0_102] : memref<40x128xf32, #tpu.memory_space<vmem>>, vector<30x128xf32>
    tpu.vector_store %arg2[%c8_101, %c0_102], %122 {strides = array<i32>} : memref<40x128xf32, #tpu.memory_space<vmem>>, vector<30x128xf32>,
    %c8_103 = arith.constant 8 : index
    %c0_104 = arith.constant 0 : index
    %124 = vector.load %arg2[%c8_103, %c0_104] : memref<40x128xf32, #tpu.memory_space<vmem>>, vector<30x128xf32>
    %c7_105 = arith.constant 7 : index
    %c0_106 = arith.constant 0 : index
    %125 = vector.load %arg2[%c7_105, %c0_106] : memref<40x128xf32, #tpu.memory_space<vmem>>, vector<30x128xf32>
    %c9_107 = arith.constant 9 : index
    %c0_108 = arith.constant 0 : index
    %126 = vector.load %arg2[%c9_107, %c0_108] : memref<40x128xf32, #tpu.memory_space<vmem>>, vector<30x128xf32>
    %c127_i32_109 = arith.constant 127 : i32
    %127 = tpu.dynamic_rotate %124 by %c127_i32_109 dim 1 : vector<30x128xf32>, i32 -> vector<30x128xf32>
    %c1_i32_110 = arith.constant 1 : i32
    %128 = tpu.dynamic_rotate %124 by %c1_i32_110 dim 1 : vector<30x128xf32>, i32 -> vector<30x128xf32>
    %129 = arith.addf %127, %128 : vector<30x128xf32>
    %130 = arith.addf %125, %126 : vector<30x128xf32>
    %131 = arith.addf %129, %130 : vector<30x128xf32>
    %132 = vector.broadcast %10 : vector<1x128xf32> to vector<30x128xf32>
    %133 = arith.mulf %131, %132 : vector<30x128xf32>
    %c8_111 = arith.constant 8 : index
    %c0_112 = arith.constant 0 : index
    %134 = vector.load %arg2[%c8_111, %c0_112] : memref<40x128xf32, #tpu.memory_space<vmem>>, vector<30x128xf32>
    tpu.vector_store %arg2[%c8_111, %c0_112], %133 {strides = array<i32>} : memref<40x128xf32, #tpu.memory_space<vmem>>, vector<30x128xf32>,
    %c8_113 = arith.constant 8 : index
    %c0_114 = arith.constant 0 : index
    %135 = vector.load %arg2[%c8_113, %c0_114] : memref<40x128xf32, #tpu.memory_space<vmem>>, vector<30x128xf32>
    %c7_115 = arith.constant 7 : index
    %c0_116 = arith.constant 0 : index
    %136 = vector.load %arg2[%c7_115, %c0_116] : memref<40x128xf32, #tpu.memory_space<vmem>>, vector<30x128xf32>
    %c9_117 = arith.constant 9 : index
    %c0_118 = arith.constant 0 : index
    %137 = vector.load %arg2[%c9_117, %c0_118] : memref<40x128xf32, #tpu.memory_space<vmem>>, vector<30x128xf32>
    %c127_i32_119 = arith.constant 127 : i32
    %138 = tpu.dynamic_rotate %135 by %c127_i32_119 dim 1 : vector<30x128xf32>, i32 -> vector<30x128xf32>
    %c1_i32_120 = arith.constant 1 : i32
    %139 = tpu.dynamic_rotate %135 by %c1_i32_120 dim 1 : vector<30x128xf32>, i32 -> vector<30x128xf32>
    %140 = arith.addf %138, %139 : vector<30x128xf32>
    %141 = arith.addf %136, %137 : vector<30x128xf32>
    %142 = arith.addf %140, %141 : vector<30x128xf32>
    %143 = vector.broadcast %10 : vector<1x128xf32> to vector<30x128xf32>
    %144 = arith.mulf %142, %143 : vector<30x128xf32>
    %c8_121 = arith.constant 8 : index
    %c0_122 = arith.constant 0 : index
    %145 = vector.load %arg2[%c8_121, %c0_122] : memref<40x128xf32, #tpu.memory_space<vmem>>, vector<30x128xf32>
    tpu.vector_store %arg2[%c8_121, %c0_122], %144 {strides = array<i32>} : memref<40x128xf32, #tpu.memory_space<vmem>>, vector<30x128xf32>,
    %c8_123 = arith.constant 8 : index
    %c0_124 = arith.constant 0 : index
    %146 = vector.load %arg2[%c8_123, %c0_124] : memref<40x128xf32, #tpu.memory_space<vmem>>, vector<30x128xf32>
    %c7_125 = arith.constant 7 : index
    %c0_126 = arith.constant 0 : index
    %147 = vector.load %arg2[%c7_125, %c0_126] : memref<40x128xf32, #tpu.memory_space<vmem>>, vector<30x128xf32>
    %c9_127 = arith.constant 9 : index
    %c0_128 = arith.constant 0 : index
    %148 = vector.load %arg2[%c9_127, %c0_128] : memref<40x128xf32, #tpu.memory_space<vmem>>, vector<30x128xf32>
    %c127_i32_129 = arith.constant 127 : i32
    %149 = tpu.dynamic_rotate %146 by %c127_i32_129 dim 1 : vector<30x128xf32>, i32 -> vector<30x128xf32>
    %c1_i32_130 = arith.constant 1 : i32
    %150 = tpu.dynamic_rotate %146 by %c1_i32_130 dim 1 : vector<30x128xf32>, i32 -> vector<30x128xf32>
    %151 = arith.addf %149, %150 : vector<30x128xf32>
    %152 = arith.addf %147, %148 : vector<30x128xf32>
    %153 = arith.addf %151, %152 : vector<30x128xf32>
    %154 = vector.broadcast %10 : vector<1x128xf32> to vector<30x128xf32>
    %155 = arith.mulf %153, %154 : vector<30x128xf32>
    %c8_131 = arith.constant 8 : index
    %c0_132 = arith.constant 0 : index
    %156 = vector.load %arg2[%c8_131, %c0_132] : memref<40x128xf32, #tpu.memory_space<vmem>>, vector<30x128xf32>
    tpu.vector_store %arg2[%c8_131, %c0_132], %155 {strides = array<i32>} : memref<40x128xf32, #tpu.memory_space<vmem>>, vector<30x128xf32>,
    %c8_133 = arith.constant 8 : index
    %c0_134 = arith.constant 0 : index
    %157 = vector.load %arg2[%c8_133, %c0_134] : memref<40x128xf32, #tpu.memory_space<vmem>>, vector<30x128xf32>
    %c7_135 = arith.constant 7 : index
    %c0_136 = arith.constant 0 : index
    %158 = vector.load %arg2[%c7_135, %c0_136] : memref<40x128xf32, #tpu.memory_space<vmem>>, vector<30x128xf32>
    %c9_137 = arith.constant 9 : index
    %c0_138 = arith.constant 0 : index
    %159 = vector.load %arg2[%c9_137, %c0_138] : memref<40x128xf32, #tpu.memory_space<vmem>>, vector<30x128xf32>
    %c127_i32_139 = arith.constant 127 : i32
    %160 = tpu.dynamic_rotate %157 by %c127_i32_139 dim 1 : vector<30x128xf32>, i32 -> vector<30x128xf32>
    %c1_i32_140 = arith.constant 1 : i32
    %161 = tpu.dynamic_rotate %157 by %c1_i32_140 dim 1 : vector<30x128xf32>, i32 -> vector<30x128xf32>
    %162 = arith.addf %160, %161 : vector<30x128xf32>
    %163 = arith.addf %158, %159 : vector<30x128xf32>
    %164 = arith.addf %162, %163 : vector<30x128xf32>
    %165 = vector.broadcast %10 : vector<1x128xf32> to vector<30x128xf32>
    %166 = arith.mulf %164, %165 : vector<30x128xf32>
    %c8_141 = arith.constant 8 : index
    %c0_142 = arith.constant 0 : index
    %167 = vector.load %arg2[%c8_141, %c0_142] : memref<40x128xf32, #tpu.memory_space<vmem>>, vector<30x128xf32>
    tpu.vector_store %arg2[%c8_141, %c0_142], %166 {strides = array<i32>} : memref<40x128xf32, #tpu.memory_space<vmem>>, vector<30x128xf32>,
    %c8_143 = arith.constant 8 : index
    %c0_144 = arith.constant 0 : index
    %168 = vector.load %arg2[%c8_143, %c0_144] : memref<40x128xf32, #tpu.memory_space<vmem>>, vector<30x128xf32>
    %c7_145 = arith.constant 7 : index
    %c0_146 = arith.constant 0 : index
    %169 = vector.load %arg2[%c7_145, %c0_146] : memref<40x128xf32, #tpu.memory_space<vmem>>, vector<30x128xf32>
    %c9_147 = arith.constant 9 : index
    %c0_148 = arith.constant 0 : index
    %170 = vector.load %arg2[%c9_147, %c0_148] : memref<40x128xf32, #tpu.memory_space<vmem>>, vector<30x128xf32>
    %c127_i32_149 = arith.constant 127 : i32
    %171 = tpu.dynamic_rotate %168 by %c127_i32_149 dim 1 : vector<30x128xf32>, i32 -> vector<30x128xf32>
    %c1_i32_150 = arith.constant 1 : i32
    %172 = tpu.dynamic_rotate %168 by %c1_i32_150 dim 1 : vector<30x128xf32>, i32 -> vector<30x128xf32>
    %173 = arith.addf %171, %172 : vector<30x128xf32>
    %174 = arith.addf %169, %170 : vector<30x128xf32>
    %175 = arith.addf %173, %174 : vector<30x128xf32>
    %176 = vector.broadcast %10 : vector<1x128xf32> to vector<30x128xf32>
    %177 = arith.mulf %175, %176 : vector<30x128xf32>
    %c8_151 = arith.constant 8 : index
    %c0_152 = arith.constant 0 : index
    %178 = vector.load %arg2[%c8_151, %c0_152] : memref<40x128xf32, #tpu.memory_space<vmem>>, vector<30x128xf32>
    tpu.vector_store %arg2[%c8_151, %c0_152], %177 {strides = array<i32>} : memref<40x128xf32, #tpu.memory_space<vmem>>, vector<30x128xf32>,
    %c8_153 = arith.constant 8 : index
    %c0_154 = arith.constant 0 : index
    %179 = vector.load %arg2[%c8_153, %c0_154] : memref<40x128xf32, #tpu.memory_space<vmem>>, vector<30x128xf32>
    %c7_155 = arith.constant 7 : index
    %c0_156 = arith.constant 0 : index
    %180 = vector.load %arg2[%c7_155, %c0_156] : memref<40x128xf32, #tpu.memory_space<vmem>>, vector<30x128xf32>
    %c9_157 = arith.constant 9 : index
    %c0_158 = arith.constant 0 : index
    %181 = vector.load %arg2[%c9_157, %c0_158] : memref<40x128xf32, #tpu.memory_space<vmem>>, vector<30x128xf32>
    %c127_i32_159 = arith.constant 127 : i32
    %182 = tpu.dynamic_rotate %179 by %c127_i32_159 dim 1 : vector<30x128xf32>, i32 -> vector<30x128xf32>
    %c1_i32_160 = arith.constant 1 : i32
    %183 = tpu.dynamic_rotate %179 by %c1_i32_160 dim 1 : vector<30x128xf32>, i32 -> vector<30x128xf32>
    %184 = arith.addf %182, %183 : vector<30x128xf32>
    %185 = arith.addf %180, %181 : vector<30x128xf32>
    %186 = arith.addf %184, %185 : vector<30x128xf32>
    %187 = vector.broadcast %10 : vector<1x128xf32> to vector<30x128xf32>
    %188 = arith.mulf %186, %187 : vector<30x128xf32>
    %c8_161 = arith.constant 8 : index
    %c0_162 = arith.constant 0 : index
    %189 = vector.load %arg2[%c8_161, %c0_162] : memref<40x128xf32, #tpu.memory_space<vmem>>, vector<30x128xf32>
    tpu.vector_store %arg2[%c8_161, %c0_162], %188 {strides = array<i32>} : memref<40x128xf32, #tpu.memory_space<vmem>>, vector<30x128xf32>,
    %c8_163 = arith.constant 8 : index
    %c0_164 = arith.constant 0 : index
    %190 = vector.load %arg2[%c8_163, %c0_164] : memref<40x128xf32, #tpu.memory_space<vmem>>, vector<30x128xf32>
    %c7_165 = arith.constant 7 : index
    %c0_166 = arith.constant 0 : index
    %191 = vector.load %arg2[%c7_165, %c0_166] : memref<40x128xf32, #tpu.memory_space<vmem>>, vector<30x128xf32>
    %c9_167 = arith.constant 9 : index
    %c0_168 = arith.constant 0 : index
    %192 = vector.load %arg2[%c9_167, %c0_168] : memref<40x128xf32, #tpu.memory_space<vmem>>, vector<30x128xf32>
    %c127_i32_169 = arith.constant 127 : i32
    %193 = tpu.dynamic_rotate %190 by %c127_i32_169 dim 1 : vector<30x128xf32>, i32 -> vector<30x128xf32>
    %c1_i32_170 = arith.constant 1 : i32
    %194 = tpu.dynamic_rotate %190 by %c1_i32_170 dim 1 : vector<30x128xf32>, i32 -> vector<30x128xf32>
    %195 = arith.addf %193, %194 : vector<30x128xf32>
    %196 = arith.addf %191, %192 : vector<30x128xf32>
    %197 = arith.addf %195, %196 : vector<30x128xf32>
    %198 = vector.broadcast %10 : vector<1x128xf32> to vector<30x128xf32>
    %199 = arith.mulf %197, %198 : vector<30x128xf32>
    %c8_171 = arith.constant 8 : index
    %c0_172 = arith.constant 0 : index
    %200 = vector.load %arg2[%c8_171, %c0_172] : memref<40x128xf32, #tpu.memory_space<vmem>>, vector<30x128xf32>
    tpu.vector_store %arg2[%c8_171, %c0_172], %199 {strides = array<i32>} : memref<40x128xf32, #tpu.memory_space<vmem>>, vector<30x128xf32>,
    %c8_173 = arith.constant 8 : index
    %c0_174 = arith.constant 0 : index
    %201 = vector.load %arg2[%c8_173, %c0_174] : memref<40x128xf32, #tpu.memory_space<vmem>>, vector<30x128xf32>
    %c7_175 = arith.constant 7 : index
    %c0_176 = arith.constant 0 : index
    %202 = vector.load %arg2[%c7_175, %c0_176] : memref<40x128xf32, #tpu.memory_space<vmem>>, vector<30x128xf32>
    %c9_177 = arith.constant 9 : index
    %c0_178 = arith.constant 0 : index
    %203 = vector.load %arg2[%c9_177, %c0_178] : memref<40x128xf32, #tpu.memory_space<vmem>>, vector<30x128xf32>
    %c127_i32_179 = arith.constant 127 : i32
    %204 = tpu.dynamic_rotate %201 by %c127_i32_179 dim 1 : vector<30x128xf32>, i32 -> vector<30x128xf32>
    %c1_i32_180 = arith.constant 1 : i32
    %205 = tpu.dynamic_rotate %201 by %c1_i32_180 dim 1 : vector<30x128xf32>, i32 -> vector<30x128xf32>
    %206 = arith.addf %204, %205 : vector<30x128xf32>
    %207 = arith.addf %202, %203 : vector<30x128xf32>
    %208 = arith.addf %206, %207 : vector<30x128xf32>
    %209 = vector.broadcast %10 : vector<1x128xf32> to vector<30x128xf32>
    %210 = arith.mulf %208, %209 : vector<30x128xf32>
    %c8_181 = arith.constant 8 : index
    %c0_182 = arith.constant 0 : index
    %211 = vector.load %arg2[%c8_181, %c0_182] : memref<40x128xf32, #tpu.memory_space<vmem>>, vector<30x128xf32>
    tpu.vector_store %arg2[%c8_181, %c0_182], %210 {strides = array<i32>} : memref<40x128xf32, #tpu.memory_space<vmem>>, vector<30x128xf32>,
    %c8_183 = arith.constant 8 : index
    %c0_184 = arith.constant 0 : index
    %212 = vector.load %arg2[%c8_183, %c0_184] : memref<40x128xf32, #tpu.memory_space<vmem>>, vector<30x128xf32>
    %c7_185 = arith.constant 7 : index
    %c0_186 = arith.constant 0 : index
    %213 = vector.load %arg2[%c7_185, %c0_186] : memref<40x128xf32, #tpu.memory_space<vmem>>, vector<30x128xf32>
    %c9_187 = arith.constant 9 : index
    %c0_188 = arith.constant 0 : index
    %214 = vector.load %arg2[%c9_187, %c0_188] : memref<40x128xf32, #tpu.memory_space<vmem>>, vector<30x128xf32>
    %c127_i32_189 = arith.constant 127 : i32
    %215 = tpu.dynamic_rotate %212 by %c127_i32_189 dim 1 : vector<30x128xf32>, i32 -> vector<30x128xf32>
    %c1_i32_190 = arith.constant 1 : i32
    %216 = tpu.dynamic_rotate %212 by %c1_i32_190 dim 1 : vector<30x128xf32>, i32 -> vector<30x128xf32>
    %217 = arith.addf %215, %216 : vector<30x128xf32>
    %218 = arith.addf %213, %214 : vector<30x128xf32>
    %219 = arith.addf %217, %218 : vector<30x128xf32>
    %220 = vector.broadcast %10 : vector<1x128xf32> to vector<30x128xf32>
    %221 = arith.mulf %219, %220 : vector<30x128xf32>
    %c8_191 = arith.constant 8 : index
    %c0_192 = arith.constant 0 : index
    %222 = vector.load %arg2[%c8_191, %c0_192] : memref<40x128xf32, #tpu.memory_space<vmem>>, vector<30x128xf32>
    tpu.vector_store %arg2[%c8_191, %c0_192], %221 {strides = array<i32>} : memref<40x128xf32, #tpu.memory_space<vmem>>, vector<30x128xf32>,
    %c8_193 = arith.constant 8 : index
    %c0_194 = arith.constant 0 : index
    %223 = vector.load %arg2[%c8_193, %c0_194] : memref<40x128xf32, #tpu.memory_space<vmem>>, vector<30x128xf32>
    %c7_195 = arith.constant 7 : index
    %c0_196 = arith.constant 0 : index
    %224 = vector.load %arg2[%c7_195, %c0_196] : memref<40x128xf32, #tpu.memory_space<vmem>>, vector<30x128xf32>
    %c9_197 = arith.constant 9 : index
    %c0_198 = arith.constant 0 : index
    %225 = vector.load %arg2[%c9_197, %c0_198] : memref<40x128xf32, #tpu.memory_space<vmem>>, vector<30x128xf32>
    %c127_i32_199 = arith.constant 127 : i32
    %226 = tpu.dynamic_rotate %223 by %c127_i32_199 dim 1 : vector<30x128xf32>, i32 -> vector<30x128xf32>
    %c1_i32_200 = arith.constant 1 : i32
    %227 = tpu.dynamic_rotate %223 by %c1_i32_200 dim 1 : vector<30x128xf32>, i32 -> vector<30x128xf32>
    %228 = arith.addf %226, %227 : vector<30x128xf32>
    %229 = arith.addf %224, %225 : vector<30x128xf32>
    %230 = arith.addf %228, %229 : vector<30x128xf32>
    %231 = vector.broadcast %10 : vector<1x128xf32> to vector<30x128xf32>
    %232 = arith.mulf %230, %231 : vector<30x128xf32>
    %c8_201 = arith.constant 8 : index
    %c0_202 = arith.constant 0 : index
    %233 = vector.load %arg2[%c8_201, %c0_202] : memref<40x128xf32, #tpu.memory_space<vmem>>, vector<30x128xf32>
    tpu.vector_store %arg2[%c8_201, %c0_202], %232 {strides = array<i32>} : memref<40x128xf32, #tpu.memory_space<vmem>>, vector<30x128xf32>,
    %c7_203 = arith.constant 7 : index
    %c0_204 = arith.constant 0 : index
    %234 = vector.load %arg2[%c7_203, %c0_204] : memref<40x128xf32, #tpu.memory_space<vmem>>, vector<32x128xf32>
    %c0_205 = arith.constant 0 : index
    %c0_206 = arith.constant 0 : index
    %235 = vector.load %arg1[%c0_205, %c0_206] : memref<32x128xf32, #tpu.memory_space<vmem>>, vector<32x128xf32>
    tpu.vector_store %arg1[%c0_205, %c0_206], %234 {strides = array<i32>} : memref<32x128xf32, #tpu.memory_space<vmem>>, vector<32x128xf32>,
    return
  }
}

</mosaic_0001>

<llo_original>
// kernel: tpu_custom_call.1
$region0: #{tpu_custom_call.1}
  #allocation0 [shape = 'u32[]', space=smem, size = 0x4, offset = 0x4, fixed_abs, tag = 'smem constant byte address 0x4 - core index']
  #allocation1 [shape = 'u32[72,128]{1,0:T(1,128)}', space=vmem, size = 0x9000, scoped, tag = 'internal scratch']
  #allocation2 [shape = 'f32[40,128]{1,0:T(8,128)}', space=vmem, size = 0x5000, scoped, tag = 'scratch operand']
  %s0 = inlined_call_operand.hbm [shape: f32[32,128], index: 0, kind: input, shape index: {}]
  %s1 = inlined_call_operand.hbm [shape: f32[32,128], index: 1, kind: output, shape index: {}]
  %s2 = sld [smem:[#allocation0]]
  $region18: #{tpu_custom_call.1} parent=0
    _
  %s4 = ssub.s32 1, %s2
  %s5 = scalar_select 0, %s4, %s2
  $region1: #{tpu_custom_call.1} parent=0
    #allocation3 [shape = 'u8[16384]{0}', space=vmem, size = 0x4000, scoped, tag = 'input window, operand 0, single buffered']
    #allocation4 [shape = 's32[1]{0}', space=sflag, size = 0x4, scoped, tag = 'scoped memory for tpu_custom_call.1']
    #allocation5 [shape = 's32[1]{0}', space=sflag, size = 0x4, scoped, tag = 'scoped memory for tpu_custom_call.1']
    #allocation6 [shape = 'u8[16384]{0}', space=vmem, size = 0x4000, scoped, tag = 'output window, operand 0, single buffered']
    %6 = vsyncpa [#allocation4], 0
    %7 = vsyncpa [#allocation5], 0
    // Predicated region
    $region2: #{tpu_custom_call.1} parent=1 // pred_check
      _
    $region3: #{tpu_custom_call.1} parent=1 // pred_check_branch
      %9 = sbr.rel (0) target = $region5
    $region4: #{tpu_custom_call.1} parent=1 // pred_region
      %11 = vsyncadd [#allocation4], 0
      %s12 = sshll.u32 %s0, 4
      %s13 = int_to_ptr.hbm [resolvable:$true] %s12
      %s14 = sshll.u32 [#allocation3], 4
      %s15 = int_to_ptr.vmem [resolvable:$true] %s14
      %20 = dma.hbm_to_vmem [thread:$0]  %s13, 512, %s15, [#allocation4], 128, 128, 8
    $region5: #{tpu_custom_call.1} parent=1 // pred_fallthru
      _
    // Predicated region
    $region6: #{tpu_custom_call.1} parent=1 // pred_check
      _
    $region7: #{tpu_custom_call.1} parent=1 // pred_check_branch
      %22 = sbr.rel (0) target = $region9
    $region8: #{tpu_custom_call.1} parent=1 // pred_region
      %24 = dma.done [#allocation4], 512
    $region9: #{tpu_custom_call.1} parent=1 // pred_fallthru
      _
    %v25 = vld [vmem:[#allocation3] sm:$0xff]
    %v26 = vld [vmem:[#allocation3 + $0x8] sm:$0xff]
    %v27 = vld [vmem:[#allocation3 + $0x10] sm:$0xff]
    %v28 = vld [vmem:[#allocation3 + $0x18] sm:$0xff]
    %29 = vst [vmem:[#allocation2 + $0x7] sm:$0xff] %v25
    %30 = vst [vmem:[#allocation2 + $0xf] sm:$0xff] %v26
    %31 = vst [vmem:[#allocation2 + $0x17] sm:$0xff] %v27
    %32 = vst [vmem:[#allocation2 + $0x1f] sm:$0xff] %v28
    %v33 = vlaneseq
    %v34 = vand.u32 %v33, 127
    %vm35 = vcmp.gt.s32.totalorder %v34, 0
    %vm36 = vcmp.lt.s32.totalorder %v34, 31
    %vm37 = vmand %vm35, %vm36
    %v38 = vsel %vm37, 0.25, 0.0
    %v39 = vld [vmem:[#allocation2 + $0x8] sm:$0xff]
    %v40 = vld [vmem:[#allocation2 + $0x10] sm:$0xff]
    %v41 = vld [vmem:[#allocation2 + $0x18] sm:$0xff]
    %v42 = vld [vmem:[#allocation2 + $0x20] sm:$0x3f]
    %v43 = vld [vmem:[#allocation2 + $0x7] sm:$0xff]
    %v44 = vld [vmem:[#allocation2 + $0xf] sm:$0xff]
    %v45 = vld [vmem:[#allocation2 + $0x17] sm:$0xff]
    %v46 = vld [vmem:[#allocation2 + $0x1f] sm:$0x3f]
    %v47 = vld [vmem:[#allocation2 + $0x9] sm:$0xff]
    %v48 = vld [vmem:[#allocation2 + $0x11] sm:$0xff]
    %v49 = vld [vmem:[#allocation2 + $0x19] sm:$0xff]
    %v50 = vld [vmem:[#allocation2 + $0x21] sm:$0x3f]
    %51 = vrot.lane.b32.xlu0 %v39, 127
    %v52 = vpop.permute.xlu0 %51
    %53 = vrot.lane.b32.xlu0 %v40, 127
    %v54 = vpop.permute.xlu0 %53
    %55 = vrot.lane.b32.xlu0 %v41, 127
    %v56 = vpop.permute.xlu0 %55
    %57 = vrot.lane.b32.xlu0 %v42, 127
    %v58 = vpop.permute.xlu0 %57
    %59 = vrot.lane.b32.xlu0 %v39, 1
    %v60 = vpop.permute.xlu0 %59
    %61 = vrot.lane.b32.xlu0 %v40, 1
    %v62 = vpop.permute.xlu0 %61
    %63 = vrot.lane.b32.xlu0 %v41, 1
    %v64 = vpop.permute.xlu0 %63
    %65 = vrot.lane.b32.xlu0 %v42, 1
    %v66 = vpop.permute.xlu0 %65
    %v67 = vadd.f32 %v52, %v60
    %v68 = vadd.f32 %v54, %v62
    %v69 = vadd.f32 %v56, %v64
    %v70 = vadd.f32 %v58, %v66
    %v71 = vadd.f32 %v43, %v47
    %v72 = vadd.f32 %v44, %v48
    %v73 = vadd.f32 %v45, %v49
    %v74 = vadd.f32 %v46, %v50
    %v75 = vadd.f32 %v67, %v71
    %v76 = vadd.f32 %v68, %v72
    %v77 = vadd.f32 %v69, %v73
    %v78 = vadd.f32 %v70, %v74
    %v79 = vmul.f32 %v75, %v38
    %v80 = vmul.f32 %v76, %v38
    %v81 = vmul.f32 %v77, %v38
    %v82 = vmul.f32 %v78, %v38
    %83 = vst [vmem:[#allocation2 + $0x8] sm:$0xff] %v79
    %84 = vst [vmem:[#allocation2 + $0x10] sm:$0xff] %v80
    %85 = vst [vmem:[#allocation2 + $0x18] sm:$0xff] %v81
    %86 = vst [vmem:[#allocation2 + $0x20] sm:$0x3f] %v82
    %87 = vst [vmem:[#allocation2 + $0x7] sm:$0x1] 0.0
    %88 = vst [vmem:[#allocation2 + $0x26] sm:$0x1] 0.0
    %v89 = vld [vmem:[#allocation2 + $0x8] sm:$0xff]
    %v90 = vld [vmem:[#allocation2 + $0x10] sm:$0xff]
    %v91 = vld [vmem:[#allocation2 + $0x18] sm:$0xff]
    %v92 = vld [vmem:[#allocation2 + $0x20] sm:$0x3f]
    %v93 = vld [vmem:[#allocation2 + $0x7] sm:$0xff]
    %v94 = vld [vmem:[#allocation2 + $0xf] sm:$0xff]
    %v95 = vld [vmem:[#allocation2 + $0x17] sm:$0xff]
    %v96 = vld [vmem:[#allocation2 + $0x1f] sm:$0x3f]
    %v97 = vld [vmem:[#allocation2 + $0x9] sm:$0xff]
    %v98 = vld [vmem:[#allocation2 + $0x11] sm:$0xff]
    %v99 = vld [vmem:[#allocation2 + $0x19] sm:$0xff]
    %v100 = vld [vmem:[#allocation2 + $0x21] sm:$0x3f]
    %101 = vrot.lane.b32.xlu0 %v89, 127
    %v102 = vpop.permute.xlu0 %101
    %103 = vrot.lane.b32.xlu0 %v90, 127
    %v104 = vpop.permute.xlu0 %103
    %105 = vrot.lane.b32.xlu0 %v91, 127
    %v106 = vpop.permute.xlu0 %105
    %107 = vrot.lane.b32.xlu0 %v92, 127
    %v108 = vpop.permute.xlu0 %107
    %109 = vrot.lane.b32.xlu0 %v89, 1
    %v110 = vpop.permute.xlu0 %109
    %111 = vrot.lane.b32.xlu0 %v90, 1
    %v112 = vpop.permute.xlu0 %111
    %113 = vrot.lane.b32.xlu0 %v91, 1
    %v114 = vpop.permute.xlu0 %113
    %115 = vrot.lane.b32.xlu0 %v92, 1
    %v116 = vpop.permute.xlu0 %115
    %v117 = vadd.f32 %v102, %v110
    %v118 = vadd.f32 %v104, %v112
    %v119 = vadd.f32 %v106, %v114
    %v120 = vadd.f32 %v108, %v116
    %v121 = vadd.f32 %v93, %v97
    %v122 = vadd.f32 %v94, %v98
    %v123 = vadd.f32 %v95, %v99
    %v124 = vadd.f32 %v96, %v100
    %v125 = vadd.f32 %v117, %v121
    %v126 = vadd.f32 %v118, %v122
    %v127 = vadd.f32 %v119, %v123
    %v128 = vadd.f32 %v120, %v124
    %v129 = vmul.f32 %v125, %v38
    %v130 = vmul.f32 %v126, %v38
    %v131 = vmul.f32 %v127, %v38
    %v132 = vmul.f32 %v128, %v38
    %133 = vst [vmem:[#allocation2 + $0x8] sm:$0xff] %v129
    %134 = vst [vmem:[#allocation2 + $0x10] sm:$0xff] %v130
    %135 = vst [vmem:[#allocation2 + $0x18] sm:$0xff] %v131
    %136 = vst [vmem:[#allocation2 + $0x20] sm:$0x3f] %v132
    %v137 = vld [vmem:[#allocation2 + $0x8] sm:$0xff]
    %v138 = vld [vmem:[#allocation2 + $0x10] sm:$0xff]
    %v139 = vld [vmem:[#allocation2 + $0x18] sm:$0xff]
    %v140 = vld [vmem:[#allocation2 + $0x20] sm:$0x3f]
    %v141 = vld [vmem:[#allocation2 + $0x7] sm:$0xff]
    %v142 = vld [vmem:[#allocation2 + $0xf] sm:$0xff]
    %v143 = vld [vmem:[#allocation2 + $0x17] sm:$0xff]
    %v144 = vld [vmem:[#allocation2 + $0x1f] sm:$0x3f]
    %v145 = vld [vmem:[#allocation2 + $0x9] sm:$0xff]
    %v146 = vld [vmem:[#allocation2 + $0x11] sm:$0xff]
    %v147 = vld [vmem:[#allocation2 + $0x19] sm:$0xff]
    %v148 = vld [vmem:[#allocation2 + $0x21] sm:$0x3f]
    %149 = vrot.lane.b32.xlu0 %v137, 127
    %v150 = vpop.permute.xlu0 %149
    %151 = vrot.lane.b32.xlu0 %v138, 127
    %v152 = vpop.permute.xlu0 %151
    %153 = vrot.lane.b32.xlu0 %v139, 127
    %v154 = vpop.permute.xlu0 %153
    %155 = vrot.lane.b32.xlu0 %v140, 127
    %v156 = vpop.permute.xlu0 %155
    %157 = vrot.lane.b32.xlu0 %v137, 1
    %v158 = vpop.permute.xlu0 %157
    %159 = vrot.lane.b32.xlu0 %v138, 1
    %v160 = vpop.permute.xlu0 %159
    %161 = vrot.lane.b32.xlu0 %v139, 1
    %v162 = vpop.permute.xlu0 %161
    %163 = vrot.lane.b32.xlu0 %v140, 1
    %v164 = vpop.permute.xlu0 %163
    %v165 = vadd.f32 %v150, %v158
    %v166 = vadd.f32 %v152, %v160
    %v167 = vadd.f32 %v154, %v162
    %v168 = vadd.f32 %v156, %v164
    %v169 = vadd.f32 %v141, %v145
    %v170 = vadd.f32 %v142, %v146
    %v171 = vadd.f32 %v143, %v147
    %v172 = vadd.f32 %v144, %v148
    %v173 = vadd.f32 %v165, %v169
    %v174 = vadd.f32 %v166, %v170
    %v175 = vadd.f32 %v167, %v171
    %v176 = vadd.f32 %v168, %v172
    %v177 = vmul.f32 %v173, %v38
    %v178 = vmul.f32 %v174, %v38
    %v179 = vmul.f32 %v175, %v38
    %v180 = vmul.f32 %v176, %v38
    %181 = vst [vmem:[#allocation2 + $0x8] sm:$0xff] %v177
    %182 = vst [vmem:[#allocation2 + $0x10] sm:$0xff] %v178
    %183 = vst [vmem:[#allocation2 + $0x18] sm:$0xff] %v179
    %184 = vst [vmem:[#allocation2 + $0x20] sm:$0x3f] %v180
    %v185 = vld [vmem:[#allocation2 + $0x8] sm:$0xff]
    %v186 = vld [vmem:[#allocation2 + $0x10] sm:$0xff]
    %v187 = vld [vmem:[#allocation2 + $0x18] sm:$0xff]
    %v188 = vld [vmem:[#allocation2 + $0x20] sm:$0x3f]
    %v189 = vld [vmem:[#allocation2 + $0x7] sm:$0xff]
    %v190 = vld [vmem:[#allocation2 + $0xf] sm:$0xff]
    %v191 = vld [vmem:[#allocation2 + $0x17] sm:$0xff]
    %v192 = vld [vmem:[#allocation2 + $0x1f] sm:$0x3f]
    %v193 = vld [vmem:[#allocation2 + $0x9] sm:$0xff]
    %v194 = vld [vmem:[#allocation2 + $0x11] sm:$0xff]
    %v195 = vld [vmem:[#allocation2 + $0x19] sm:$0xff]
    %v196 = vld [vmem:[#allocation2 + $0x21] sm:$0x3f]
    %197 = vrot.lane.b32.xlu0 %v185, 127
    %v198 = vpop.permute.xlu0 %197
    %199 = vrot.lane.b32.xlu0 %v186, 127
    %v200 = vpop.permute.xlu0 %199
    %201 = vrot.lane.b32.xlu0 %v187, 127
    %v202 = vpop.permute.xlu0 %201
    %203 = vrot.lane.b32.xlu0 %v188, 127
    %v204 = vpop.permute.xlu0 %203
    %205 = vrot.lane.b32.xlu0 %v185, 1
    %v206 = vpop.permute.xlu0 %205
    %207 = vrot.lane.b32.xlu0 %v186, 1
    %v208 = vpop.permute.xlu0 %207
    %209 = vrot.lane.b32.xlu0 %v187, 1
    %v210 = vpop.permute.xlu0 %209
    %211 = vrot.lane.b32.xlu0 %v188, 1
    %v212 = vpop.permute.xlu0 %211
    %v213 = vadd.f32 %v198, %v206
    %v214 = vadd.f32 %v200, %v208
    %v215 = vadd.f32 %v202, %v210
    %v216 = vadd.f32 %v204, %v212
    %v217 = vadd.f32 %v189, %v193
    %v218 = vadd.f32 %v190, %v194
    %v219 = vadd.f32 %v191, %v195
    %v220 = vadd.f32 %v192, %v196
    %v221 = vadd.f32 %v213, %v217
    %v222 = vadd.f32 %v214, %v218
    %v223 = vadd.f32 %v215, %v219
    %v224 = vadd.f32 %v216, %v220
    %v225 = vmul.f32 %v221, %v38
    %v226 = vmul.f32 %v222, %v38
    %v227 = vmul.f32 %v223, %v38
    %v228 = vmul.f32 %v224, %v38
    %229 = vst [vmem:[#allocation2 + $0x8] sm:$0xff] %v225
    %230 = vst [vmem:[#allocation2 + $0x10] sm:$0xff] %v226
    %231 = vst [vmem:[#allocation2 + $0x18] sm:$0xff] %v227
    %232 = vst [vmem:[#allocation2 + $0x20] sm:$0x3f] %v228
    %v233 = vld [vmem:[#allocation2 + $0x8] sm:$0xff]
    %v234 = vld [vmem:[#allocation2 + $0x10] sm:$0xff]
    %v235 = vld [vmem:[#allocation2 + $0x18] sm:$0xff]
    %v236 = vld [vmem:[#allocation2 + $0x20] sm:$0x3f]
    %v237 = vld [vmem:[#allocation2 + $0x7] sm:$0xff]
    %v238 = vld [vmem:[#allocation2 + $0xf] sm:$0xff]
    %v239 = vld [vmem:[#allocation2 + $0x17] sm:$0xff]
    %v240 = vld [vmem:[#allocation2 + $0x1f] sm:$0x3f]
    %v241 = vld [vmem:[#allocation2 + $0x9] sm:$0xff]
    %v242 = vld [vmem:[#allocation2 + $0x11] sm:$0xff]
    %v243 = vld [vmem:[#allocation2 + $0x19] sm:$0xff]
    %v244 = vld [vmem:[#allocation2 + $0x21] sm:$0x3f]
    %245 = vrot.lane.b32.xlu0 %v233, 127
    %v246 = vpop.permute.xlu0 %245
    %247 = vrot.lane.b32.xlu0 %v234, 127
    %v248 = vpop.permute.xlu0 %247
    %249 = vrot.lane.b32.xlu0 %v235, 127
    %v250 = vpop.permute.xlu0 %249
    %251 = vrot.lane.b32.xlu0 %v236, 127
    %v252 = vpop.permute.xlu0 %251
    %253 = vrot.lane.b32.xlu0 %v233, 1
    %v254 = vpop.permute.xlu0 %253
    %255 = vrot.lane.b32.xlu0 %v234, 1
    %v256 = vpop.permute.xlu0 %255
    %257 = vrot.lane.b32.xlu0 %v235, 1
    %v258 = vpop.permute.xlu0 %257
    %259 = vrot.lane.b32.xlu0 %v236, 1
    %v260 = vpop.permute.xlu0 %259
    %v261 = vadd.f32 %v246, %v254
    %v262 = vadd.f32 %v248, %v256
    %v263 = vadd.f32 %v250, %v258
    %v264 = vadd.f32 %v252, %v260
    %v265 = vadd.f32 %v237, %v241
    %v266 = vadd.f32 %v238, %v242
    %v267 = vadd.f32 %v239, %v243
    %v268 = vadd.f32 %v240, %v244
    %v269 = vadd.f32 %v261, %v265
    %v270 = vadd.f32 %v262, %v266
    %v271 = vadd.f32 %v263, %v267
    %v272 = vadd.f32 %v264, %v268
    %v273 = vmul.f32 %v269, %v38
    %v274 = vmul.f32 %v270, %v38
    %v275 = vmul.f32 %v271, %v38
    %v276 = vmul.f32 %v272, %v38
    %277 = vst [vmem:[#allocation2 + $0x8] sm:$0xff] %v273
    %278 = vst [vmem:[#allocation2 + $0x10] sm:$0xff] %v274
    %279 = vst [vmem:[#allocation2 + $0x18] sm:$0xff] %v275
    %280 = vst [vmem:[#allocation2 + $0x20] sm:$0x3f] %v276
    %v281 = vld [vmem:[#allocation2 + $0x8] sm:$0xff]
    %v282 = vld [vmem:[#allocation2 + $0x10] sm:$0xff]
    %v283 = vld [vmem:[#allocation2 + $0x18] sm:$0xff]
    %v284 = vld [vmem:[#allocation2 + $0x20] sm:$0x3f]
    %v285 = vld [vmem:[#allocation2 + $0x7] sm:$0xff]
    %v286 = vld [vmem:[#allocation2 + $0xf] sm:$0xff]
    %v287 = vld [vmem:[#allocation2 + $0x17] sm:$0xff]
    %v288 = vld [vmem:[#allocation2 + $0x1f] sm:$0x3f]
    %v289 = vld [vmem:[#allocation2 + $0x9] sm:$0xff]
    %v290 = vld [vmem:[#allocation2 + $0x11] sm:$0xff]
    %v291 = vld [vmem:[#allocation2 + $0x19] sm:$0xff]
    %v292 = vld [vmem:[#allocation2 + $0x21] sm:$0x3f]
    %293 = vrot.lane.b32.xlu0 %v281, 127
    %v294 = vpop.permute.xlu0 %293
    %295 = vrot.lane.b32.xlu0 %v282, 127
    %v296 = vpop.permute.xlu0 %295
    %297 = vrot.lane.b32.xlu0 %v283, 127
    %v298 = vpop.permute.xlu0 %297
    %299 = vrot.lane.b32.xlu0 %v284, 127
    %v300 = vpop.permute.xlu0 %299
    %301 = vrot.lane.b32.xlu0 %v281, 1
    %v302 = vpop.permute.xlu0 %301
    %303 = vrot.lane.b32.xlu0 %v282, 1
    %v304 = vpop.permute.xlu0 %303
    %305 = vrot.lane.b32.xlu0 %v283, 1
    %v306 = vpop.permute.xlu0 %305
    %307 = vrot.lane.b32.xlu0 %v284, 1
    %v308 = vpop.permute.xlu0 %307
    %v309 = vadd.f32 %v294, %v302
    %v310 = vadd.f32 %v296, %v304
    %v311 = vadd.f32 %v298, %v306
    %v312 = vadd.f32 %v300, %v308
    %v313 = vadd.f32 %v285, %v289
    %v314 = vadd.f32 %v286, %v290
    %v315 = vadd.f32 %v287, %v291
    %v316 = vadd.f32 %v288, %v292
    %v317 = vadd.f32 %v309, %v313
    %v318 = vadd.f32 %v310, %v314
    %v319 = vadd.f32 %v311, %v315
    %v320 = vadd.f32 %v312, %v316
    %v321 = vmul.f32 %v317, %v38
    %v322 = vmul.f32 %v318, %v38
    %v323 = vmul.f32 %v319, %v38
    %v324 = vmul.f32 %v320, %v38
    %325 = vst [vmem:[#allocation2 + $0x8] sm:$0xff] %v321
    %326 = vst [vmem:[#allocation2 + $0x10] sm:$0xff] %v322
    %327 = vst [vmem:[#allocation2 + $0x18] sm:$0xff] %v323
    %328 = vst [vmem:[#allocation2 + $0x20] sm:$0x3f] %v324
    %v329 = vld [vmem:[#allocation2 + $0x8] sm:$0xff]
    %v330 = vld [vmem:[#allocation2 + $0x10] sm:$0xff]
    %v331 = vld [vmem:[#allocation2 + $0x18] sm:$0xff]
    %v332 = vld [vmem:[#allocation2 + $0x20] sm:$0x3f]
    %v333 = vld [vmem:[#allocation2 + $0x7] sm:$0xff]
    %v334 = vld [vmem:[#allocation2 + $0xf] sm:$0xff]
    %v335 = vld [vmem:[#allocation2 + $0x17] sm:$0xff]
    %v336 = vld [vmem:[#allocation2 + $0x1f] sm:$0x3f]
    %v337 = vld [vmem:[#allocation2 + $0x9] sm:$0xff]
    %v338 = vld [vmem:[#allocation2 + $0x11] sm:$0xff]
    %v339 = vld [vmem:[#allocation2 + $0x19] sm:$0xff]
    %v340 = vld [vmem:[#allocation2 + $0x21] sm:$0x3f]
    %341 = vrot.lane.b32.xlu0 %v329, 127
    %v342 = vpop.permute.xlu0 %341
    %343 = vrot.lane.b32.xlu0 %v330, 127
    %v344 = vpop.permute.xlu0 %343
    %345 = vrot.lane.b32.xlu0 %v331, 127
    %v346 = vpop.permute.xlu0 %345
    %347 = vrot.lane.b32.xlu0 %v332, 127
    %v348 = vpop.permute.xlu0 %347
    %349 = vrot.lane.b32.xlu0 %v329, 1
    %v350 = vpop.permute.xlu0 %349
    %351 = vrot.lane.b32.xlu0 %v330, 1
    %v352 = vpop.permute.xlu0 %351
    %353 = vrot.lane.b32.xlu0 %v331, 1
    %v354 = vpop.permute.xlu0 %353
    %355 = vrot.lane.b32.xlu0 %v332, 1
    %v356 = vpop.permute.xlu0 %355
    %v357 = vadd.f32 %v342, %v350
    %v358 = vadd.f32 %v344, %v352
    %v359 = vadd.f32 %v346, %v354
    %v360 = vadd.f32 %v348, %v356
    %v361 = vadd.f32 %v333, %v337
    %v362 = vadd.f32 %v334, %v338
    %v363 = vadd.f32 %v335, %v339
    %v364 = vadd.f32 %v336, %v340
    %v365 = vadd.f32 %v357, %v361
    %v366 = vadd.f32 %v358, %v362
    %v367 = vadd.f32 %v359, %v363
    %v368 = vadd.f32 %v360, %v364
    %v369 = vmul.f32 %v365, %v38
    %v370 = vmul.f32 %v366, %v38
    %v371 = vmul.f32 %v367, %v38
    %v372 = vmul.f32 %v368, %v38
    %373 = vst [vmem:[#allocation2 + $0x8] sm:$0xff] %v369
    %374 = vst [vmem:[#allocation2 + $0x10] sm:$0xff] %v370
    %375 = vst [vmem:[#allocation2 + $0x18] sm:$0xff] %v371
    %376 = vst [vmem:[#allocation2 + $0x20] sm:$0x3f] %v372
    %v377 = vld [vmem:[#allocation2 + $0x8] sm:$0xff]
    %v378 = vld [vmem:[#allocation2 + $0x10] sm:$0xff]
    %v379 = vld [vmem:[#allocation2 + $0x18] sm:$0xff]
    %v380 = vld [vmem:[#allocation2 + $0x20] sm:$0x3f]
    %v381 = vld [vmem:[#allocation2 + $0x7] sm:$0xff]
    %v382 = vld [vmem:[#allocation2 + $0xf] sm:$0xff]
    %v383 = vld [vmem:[#allocation2 + $0x17] sm:$0xff]
    %v384 = vld [vmem:[#allocation2 + $0x1f] sm:$0x3f]
    %v385 = vld [vmem:[#allocation2 + $0x9] sm:$0xff]
    %v386 = vld [vmem:[#allocation2 + $0x11] sm:$0xff]
    %v387 = vld [vmem:[#allocation2 + $0x19] sm:$0xff]
    %v388 = vld [vmem:[#allocation2 + $0x21] sm:$0x3f]
    %389 = vrot.lane.b32.xlu0 %v377, 127
    %v390 = vpop.permute.xlu0 %389
    %391 = vrot.lane.b32.xlu0 %v378, 127
    %v392 = vpop.permute.xlu0 %391
    %393 = vrot.lane.b32.xlu0 %v379, 127
    %v394 = vpop.permute.xlu0 %393
    %395 = vrot.lane.b32.xlu0 %v380, 127
    %v396 = vpop.permute.xlu0 %395
    %397 = vrot.lane.b32.xlu0 %v377, 1
    %v398 = vpop.permute.xlu0 %397
    %399 = vrot.lane.b32.xlu0 %v378, 1
    %v400 = vpop.permute.xlu0 %399
    %401 = vrot.lane.b32.xlu0 %v379, 1
    %v402 = vpop.permute.xlu0 %401
    %403 = vrot.lane.b32.xlu0 %v380, 1
    %v404 = vpop.permute.xlu0 %403
    %v405 = vadd.f32 %v390, %v398
    %v406 = vadd.f32 %v392, %v400
    %v407 = vadd.f32 %v394, %v402
    %v408 = vadd.f32 %v396, %v404
    %v409 = vadd.f32 %v381, %v385
    %v410 = vadd.f32 %v382, %v386
    %v411 = vadd.f32 %v383, %v387
    %v412 = vadd.f32 %v384, %v388
    %v413 = vadd.f32 %v405, %v409
    %v414 = vadd.f32 %v406, %v410
    %v415 = vadd.f32 %v407, %v411
    %v416 = vadd.f32 %v408, %v412
    %v417 = vmul.f32 %v413, %v38
    %v418 = vmul.f32 %v414, %v38
    %v419 = vmul.f32 %v415, %v38
    %v420 = vmul.f32 %v416, %v38
    %421 = vst [vmem:[#allocation2 + $0x8] sm:$0xff] %v417
    %422 = vst [vmem:[#allocation2 + $0x10] sm:$0xff] %v418
    %423 = vst [vmem:[#allocation2 + $0x18] sm:$0xff] %v419
    %424 = vst [vmem:[#allocation2 + $0x20] sm:$0x3f] %v420
    %v425 = vld [vmem:[#allocation2 + $0x8] sm:$0xff]
    %v426 = vld [vmem:[#allocation2 + $0x10] sm:$0xff]
    %v427 = vld [vmem:[#allocation2 + $0x18] sm:$0xff]
    %v428 = vld [vmem:[#allocation2 + $0x20] sm:$0x3f]
    %v429 = vld [vmem:[#allocation2 + $0x7] sm:$0xff]
    %v430 = vld [vmem:[#allocation2 + $0xf] sm:$0xff]
    %v431 = vld [vmem:[#allocation2 + $0x17] sm:$0xff]
    %v432 = vld [vmem:[#allocation2 + $0x1f] sm:$0x3f]
    %v433 = vld [vmem:[#allocation2 + $0x9] sm:$0xff]
    %v434 = vld [vmem:[#allocation2 + $0x11] sm:$0xff]
    %v435 = vld [vmem:[#allocation2 + $0x19] sm:$0xff]
    %v436 = vld [vmem:[#allocation2 + $0x21] sm:$0x3f]
    %437 = vrot.lane.b32.xlu0 %v425, 127
    %v438 = vpop.permute.xlu0 %437
    %439 = vrot.lane.b32.xlu0 %v426, 127
    %v440 = vpop.permute.xlu0 %439
    %441 = vrot.lane.b32.xlu0 %v427, 127
    %v442 = vpop.permute.xlu0 %441
    %443 = vrot.lane.b32.xlu0 %v428, 127
    %v444 = vpop.permute.xlu0 %443
    %445 = vrot.lane.b32.xlu0 %v425, 1
    %v446 = vpop.permute.xlu0 %445
    %447 = vrot.lane.b32.xlu0 %v426, 1
    %v448 = vpop.permute.xlu0 %447
    %449 = vrot.lane.b32.xlu0 %v427, 1
    %v450 = vpop.permute.xlu0 %449
    %451 = vrot.lane.b32.xlu0 %v428, 1
    %v452 = vpop.permute.xlu0 %451
    %v453 = vadd.f32 %v438, %v446
    %v454 = vadd.f32 %v440, %v448
    %v455 = vadd.f32 %v442, %v450
    %v456 = vadd.f32 %v444, %v452
    %v457 = vadd.f32 %v429, %v433
    %v458 = vadd.f32 %v430, %v434
    %v459 = vadd.f32 %v431, %v435
    %v460 = vadd.f32 %v432, %v436
    %v461 = vadd.f32 %v453, %v457
    %v462 = vadd.f32 %v454, %v458
    %v463 = vadd.f32 %v455, %v459
    %v464 = vadd.f32 %v456, %v460
    %v465 = vmul.f32 %v461, %v38
    %v466 = vmul.f32 %v462, %v38
    %v467 = vmul.f32 %v463, %v38
    %v468 = vmul.f32 %v464, %v38
    %469 = vst [vmem:[#allocation2 + $0x8] sm:$0xff] %v465
    %470 = vst [vmem:[#allocation2 + $0x10] sm:$0xff] %v466
    %471 = vst [vmem:[#allocation2 + $0x18] sm:$0xff] %v467
    %472 = vst [vmem:[#allocation2 + $0x20] sm:$0x3f] %v468
    %v473 = vld [vmem:[#allocation2 + $0x8] sm:$0xff]
    %v474 = vld [vmem:[#allocation2 + $0x10] sm:$0xff]
    %v475 = vld [vmem:[#allocation2 + $0x18] sm:$0xff]
    %v476 = vld [vmem:[#allocation2 + $0x20] sm:$0x3f]
    %v477 = vld [vmem:[#allocation2 + $0x7] sm:$0xff]
    %v478 = vld [vmem:[#allocation2 + $0xf] sm:$0xff]
    %v479 = vld [vmem:[#allocation2 + $0x17] sm:$0xff]
    %v480 = vld [vmem:[#allocation2 + $0x1f] sm:$0x3f]
    %v481 = vld [vmem:[#allocation2 + $0x9] sm:$0xff]
    %v482 = vld [vmem:[#allocation2 + $0x11] sm:$0xff]
    %v483 = vld [vmem:[#allocation2 + $0x19] sm:$0xff]
    %v484 = vld [vmem:[#allocation2 + $0x21] sm:$0x3f]
    %485 = vrot.lane.b32.xlu0 %v473, 127
    %v486 = vpop.permute.xlu0 %485
    %487 = vrot.lane.b32.xlu0 %v474, 127
    %v488 = vpop.permute.xlu0 %487
    %489 = vrot.lane.b32.xlu0 %v475, 127
    %v490 = vpop.permute.xlu0 %489
    %491 = vrot.lane.b32.xlu0 %v476, 127
    %v492 = vpop.permute.xlu0 %491
    %493 = vrot.lane.b32.xlu0 %v473, 1
    %v494 = vpop.permute.xlu0 %493
    %495 = vrot.lane.b32.xlu0 %v474, 1
    %v496 = vpop.permute.xlu0 %495
    %497 = vrot.lane.b32.xlu0 %v475, 1
    %v498 = vpop.permute.xlu0 %497
    %499 = vrot.lane.b32.xlu0 %v476, 1
    %v500 = vpop.permute.xlu0 %499
    %v501 = vadd.f32 %v486, %v494
    %v502 = vadd.f32 %v488, %v496
    %v503 = vadd.f32 %v490, %v498
    %v504 = vadd.f32 %v492, %v500
    %v505 = vadd.f32 %v477, %v481
    %v506 = vadd.f32 %v478, %v482
    %v507 = vadd.f32 %v479, %v483
    %v508 = vadd.f32 %v480, %v484
    %v509 = vadd.f32 %v501, %v505
    %v510 = vadd.f32 %v502, %v506
    %v511 = vadd.f32 %v503, %v507
    %v512 = vadd.f32 %v504, %v508
    %v513 = vmul.f32 %v509, %v38
    %v514 = vmul.f32 %v510, %v38
    %v515 = vmul.f32 %v511, %v38
    %v516 = vmul.f32 %v512, %v38
    %517 = vst [vmem:[#allocation2 + $0x8] sm:$0xff] %v513
    %518 = vst [vmem:[#allocation2 + $0x10] sm:$0xff] %v514
    %519 = vst [vmem:[#allocation2 + $0x18] sm:$0xff] %v515
    %520 = vst [vmem:[#allocation2 + $0x20] sm:$0x3f] %v516
    %v521 = vld [vmem:[#allocation2 + $0x8] sm:$0xff]
    %v522 = vld [vmem:[#allocation2 + $0x10] sm:$0xff]
    %v523 = vld [vmem:[#allocation2 + $0x18] sm:$0xff]
    %v524 = vld [vmem:[#allocation2 + $0x20] sm:$0x3f]
    %v525 = vld [vmem:[#allocation2 + $0x7] sm:$0xff]
    %v526 = vld [vmem:[#allocation2 + $0xf] sm:$0xff]
    %v527 = vld [vmem:[#allocation2 + $0x17] sm:$0xff]
    %v528 = vld [vmem:[#allocation2 + $0x1f] sm:$0x3f]
    %v529 = vld [vmem:[#allocation2 + $0x9] sm:$0xff]
    %v530 = vld [vmem:[#allocation2 + $0x11] sm:$0xff]
    %v531 = vld [vmem:[#allocation2 + $0x19] sm:$0xff]
    %v532 = vld [vmem:[#allocation2 + $0x21] sm:$0x3f]
    %533 = vrot.lane.b32.xlu0 %v521, 127
    %v534 = vpop.permute.xlu0 %533
    %535 = vrot.lane.b32.xlu0 %v522, 127
    %v536 = vpop.permute.xlu0 %535
    %537 = vrot.lane.b32.xlu0 %v523, 127
    %v538 = vpop.permute.xlu0 %537
    %539 = vrot.lane.b32.xlu0 %v524, 127
    %v540 = vpop.permute.xlu0 %539
    %541 = vrot.lane.b32.xlu0 %v521, 1
    %v542 = vpop.permute.xlu0 %541
    %543 = vrot.lane.b32.xlu0 %v522, 1
    %v544 = vpop.permute.xlu0 %543
    %545 = vrot.lane.b32.xlu0 %v523, 1
    %v546 = vpop.permute.xlu0 %545
    %547 = vrot.lane.b32.xlu0 %v524, 1
    %v548 = vpop.permute.xlu0 %547
    %v549 = vadd.f32 %v534, %v542
    %v550 = vadd.f32 %v536, %v544
    %v551 = vadd.f32 %v538, %v546
    %v552 = vadd.f32 %v540, %v548
    %v553 = vadd.f32 %v525, %v529
    %v554 = vadd.f32 %v526, %v530
    %v555 = vadd.f32 %v527, %v531
    %v556 = vadd.f32 %v528, %v532
    %v557 = vadd.f32 %v549, %v553
    %v558 = vadd.f32 %v550, %v554
    %v559 = vadd.f32 %v551, %v555
    %v560 = vadd.f32 %v552, %v556
    %v561 = vmul.f32 %v557, %v38
    %v562 = vmul.f32 %v558, %v38
    %v563 = vmul.f32 %v559, %v38
    %v564 = vmul.f32 %v560, %v38
    %565 = vst [vmem:[#allocation2 + $0x8] sm:$0xff] %v561
    %566 = vst [vmem:[#allocation2 + $0x10] sm:$0xff] %v562
    %567 = vst [vmem:[#allocation2 + $0x18] sm:$0xff] %v563
    %568 = vst [vmem:[#allocation2 + $0x20] sm:$0x3f] %v564
    %v569 = vld [vmem:[#allocation2 + $0x8] sm:$0xff]
    %v570 = vld [vmem:[#allocation2 + $0x10] sm:$0xff]
    %v571 = vld [vmem:[#allocation2 + $0x18] sm:$0xff]
    %v572 = vld [vmem:[#allocation2 + $0x20] sm:$0x3f]
    %v573 = vld [vmem:[#allocation2 + $0x7] sm:$0xff]
    %v574 = vld [vmem:[#allocation2 + $0xf] sm:$0xff]
    %v575 = vld [vmem:[#allocation2 + $0x17] sm:$0xff]
    %v576 = vld [vmem:[#allocation2 + $0x1f] sm:$0x3f]
    %v577 = vld [vmem:[#allocation2 + $0x9] sm:$0xff]
    %v578 = vld [vmem:[#allocation2 + $0x11] sm:$0xff]
    %v579 = vld [vmem:[#allocation2 + $0x19] sm:$0xff]
    %v580 = vld [vmem:[#allocation2 + $0x21] sm:$0x3f]
    %581 = vrot.lane.b32.xlu0 %v569, 127
    %v582 = vpop.permute.xlu0 %581
    %583 = vrot.lane.b32.xlu0 %v570, 127
    %v584 = vpop.permute.xlu0 %583
    %585 = vrot.lane.b32.xlu0 %v571, 127
    %v586 = vpop.permute.xlu0 %585
    %587 = vrot.lane.b32.xlu0 %v572, 127
    %v588 = vpop.permute.xlu0 %587
    %589 = vrot.lane.b32.xlu0 %v569, 1
    %v590 = vpop.permute.xlu0 %589
    %591 = vrot.lane.b32.xlu0 %v570, 1
    %v592 = vpop.permute.xlu0 %591
    %593 = vrot.lane.b32.xlu0 %v571, 1
    %v594 = vpop.permute.xlu0 %593
    %595 = vrot.lane.b32.xlu0 %v572, 1
    %v596 = vpop.permute.xlu0 %595
    %v597 = vadd.f32 %v582, %v590
    %v598 = vadd.f32 %v584, %v592
    %v599 = vadd.f32 %v586, %v594
    %v600 = vadd.f32 %v588, %v596
    %v601 = vadd.f32 %v573, %v577
    %v602 = vadd.f32 %v574, %v578
    %v603 = vadd.f32 %v575, %v579
    %v604 = vadd.f32 %v576, %v580
    %v605 = vadd.f32 %v597, %v601
    %v606 = vadd.f32 %v598, %v602
    %v607 = vadd.f32 %v599, %v603
    %v608 = vadd.f32 %v600, %v604
    %v609 = vmul.f32 %v605, %v38
    %v610 = vmul.f32 %v606, %v38
    %v611 = vmul.f32 %v607, %v38
    %v612 = vmul.f32 %v608, %v38
    %613 = vst [vmem:[#allocation2 + $0x8] sm:$0xff] %v609
    %614 = vst [vmem:[#allocation2 + $0x10] sm:$0xff] %v610
    %615 = vst [vmem:[#allocation2 + $0x18] sm:$0xff] %v611
    %616 = vst [vmem:[#allocation2 + $0x20] sm:$0x3f] %v612
    %v617 = vld [vmem:[#allocation2 + $0x8] sm:$0xff]
    %v618 = vld [vmem:[#allocation2 + $0x10] sm:$0xff]
    %v619 = vld [vmem:[#allocation2 + $0x18] sm:$0xff]
    %v620 = vld [vmem:[#allocation2 + $0x20] sm:$0x3f]
    %v621 = vld [vmem:[#allocation2 + $0x7] sm:$0xff]
    %v622 = vld [vmem:[#allocation2 + $0xf] sm:$0xff]
    %v623 = vld [vmem:[#allocation2 + $0x17] sm:$0xff]
    %v624 = vld [vmem:[#allocation2 + $0x1f] sm:$0x3f]
    %v625 = vld [vmem:[#allocation2 + $0x9] sm:$0xff]
    %v626 = vld [vmem:[#allocation2 + $0x11] sm:$0xff]
    %v627 = vld [vmem:[#allocation2 + $0x19] sm:$0xff]
    %v628 = vld [vmem:[#allocation2 + $0x21] sm:$0x3f]
    %629 = vrot.lane.b32.xlu0 %v617, 127
    %v630 = vpop.permute.xlu0 %629
    %631 = vrot.lane.b32.xlu0 %v618, 127
    %v632 = vpop.permute.xlu0 %631
    %633 = vrot.lane.b32.xlu0 %v619, 127
    %v634 = vpop.permute.xlu0 %633
    %635 = vrot.lane.b32.xlu0 %v620, 127
    %v636 = vpop.permute.xlu0 %635
    %637 = vrot.lane.b32.xlu0 %v617, 1
    %v638 = vpop.permute.xlu0 %637
    %639 = vrot.lane.b32.xlu0 %v618, 1
    %v640 = vpop.permute.xlu0 %639
    %641 = vrot.lane.b32.xlu0 %v619, 1
    %v642 = vpop.permute.xlu0 %641
    %643 = vrot.lane.b32.xlu0 %v620, 1
    %v644 = vpop.permute.xlu0 %643
    %v645 = vadd.f32 %v630, %v638
    %v646 = vadd.f32 %v632, %v640
    %v647 = vadd.f32 %v634, %v642
    %v648 = vadd.f32 %v636, %v644
    %v649 = vadd.f32 %v621, %v625
    %v650 = vadd.f32 %v622, %v626
    %v651 = vadd.f32 %v623, %v627
    %v652 = vadd.f32 %v624, %v628
    %v653 = vadd.f32 %v645, %v649
    %v654 = vadd.f32 %v646, %v650
    %v655 = vadd.f32 %v647, %v651
    %v656 = vadd.f32 %v648, %v652
    %v657 = vmul.f32 %v653, %v38
    %v658 = vmul.f32 %v654, %v38
    %v659 = vmul.f32 %v655, %v38
    %v660 = vmul.f32 %v656, %v38
    %661 = vst [vmem:[#allocation2 + $0x8] sm:$0xff] %v657
    %662 = vst [vmem:[#allocation2 + $0x10] sm:$0xff] %v658
    %663 = vst [vmem:[#allocation2 + $0x18] sm:$0xff] %v659
    %664 = vst [vmem:[#allocation2 + $0x20] sm:$0x3f] %v660
    %v665 = vld [vmem:[#allocation2 + $0x8] sm:$0xff]
    %v666 = vld [vmem:[#allocation2 + $0x10] sm:$0xff]
    %v667 = vld [vmem:[#allocation2 + $0x18] sm:$0xff]
    %v668 = vld [vmem:[#allocation2 + $0x20] sm:$0x3f]
    %v669 = vld [vmem:[#allocation2 + $0x7] sm:$0xff]
    %v670 = vld [vmem:[#allocation2 + $0xf] sm:$0xff]
    %v671 = vld [vmem:[#allocation2 + $0x17] sm:$0xff]
    %v672 = vld [vmem:[#allocation2 + $0x1f] sm:$0x3f]
    %v673 = vld [vmem:[#allocation2 + $0x9] sm:$0xff]
    %v674 = vld [vmem:[#allocation2 + $0x11] sm:$0xff]
    %v675 = vld [vmem:[#allocation2 + $0x19] sm:$0xff]
    %v676 = vld [vmem:[#allocation2 + $0x21] sm:$0x3f]
    %677 = vrot.lane.b32.xlu0 %v665, 127
    %v678 = vpop.permute.xlu0 %677
    %679 = vrot.lane.b32.xlu0 %v666, 127
    %v680 = vpop.permute.xlu0 %679
    %681 = vrot.lane.b32.xlu0 %v667, 127
    %v682 = vpop.permute.xlu0 %681
    %683 = vrot.lane.b32.xlu0 %v668, 127
    %v684 = vpop.permute.xlu0 %683
    %685 = vrot.lane.b32.xlu0 %v665, 1
    %v686 = vpop.permute.xlu0 %685
    %687 = vrot.lane.b32.xlu0 %v666, 1
    %v688 = vpop.permute.xlu0 %687
    %689 = vrot.lane.b32.xlu0 %v667, 1
    %v690 = vpop.permute.xlu0 %689
    %691 = vrot.lane.b32.xlu0 %v668, 1
    %v692 = vpop.permute.xlu0 %691
    %v693 = vadd.f32 %v678, %v686
    %v694 = vadd.f32 %v680, %v688
    %v695 = vadd.f32 %v682, %v690
    %v696 = vadd.f32 %v684, %v692
    %v697 = vadd.f32 %v669, %v673
    %v698 = vadd.f32 %v670, %v674
    %v699 = vadd.f32 %v671, %v675
    %v700 = vadd.f32 %v672, %v676
    %v701 = vadd.f32 %v693, %v697
    %v702 = vadd.f32 %v694, %v698
    %v703 = vadd.f32 %v695, %v699
    %v704 = vadd.f32 %v696, %v700
    %v705 = vmul.f32 %v701, %v38
    %v706 = vmul.f32 %v702, %v38
    %v707 = vmul.f32 %v703, %v38
    %v708 = vmul.f32 %v704, %v38
    %709 = vst [vmem:[#allocation2 + $0x8] sm:$0xff] %v705
    %710 = vst [vmem:[#allocation2 + $0x10] sm:$0xff] %v706
    %711 = vst [vmem:[#allocation2 + $0x18] sm:$0xff] %v707
    %712 = vst [vmem:[#allocation2 + $0x20] sm:$0x3f] %v708
    %v713 = vld [vmem:[#allocation2 + $0x8] sm:$0xff]
    %v714 = vld [vmem:[#allocation2 + $0x10] sm:$0xff]
    %v715 = vld [vmem:[#allocation2 + $0x18] sm:$0xff]
    %v716 = vld [vmem:[#allocation2 + $0x20] sm:$0x3f]
    %v717 = vld [vmem:[#allocation2 + $0x7] sm:$0xff]
    %v718 = vld [vmem:[#allocation2 + $0xf] sm:$0xff]
    %v719 = vld [vmem:[#allocation2 + $0x17] sm:$0xff]
    %v720 = vld [vmem:[#allocation2 + $0x1f] sm:$0x3f]
    %v721 = vld [vmem:[#allocation2 + $0x9] sm:$0xff]
    %v722 = vld [vmem:[#allocation2 + $0x11] sm:$0xff]
    %v723 = vld [vmem:[#allocation2 + $0x19] sm:$0xff]
    %v724 = vld [vmem:[#allocation2 + $0x21] sm:$0x3f]
    %725 = vrot.lane.b32.xlu0 %v713, 127
    %v726 = vpop.permute.xlu0 %725
    %727 = vrot.lane.b32.xlu0 %v714, 127
    %v728 = vpop.permute.xlu0 %727
    %729 = vrot.lane.b32.xlu0 %v715, 127
    %v730 = vpop.permute.xlu0 %729
    %731 = vrot.lane.b32.xlu0 %v716, 127
    %v732 = vpop.permute.xlu0 %731
    %733 = vrot.lane.b32.xlu0 %v713, 1
    %v734 = vpop.permute.xlu0 %733
    %735 = vrot.lane.b32.xlu0 %v714, 1
    %v736 = vpop.permute.xlu0 %735
    %737 = vrot.lane.b32.xlu0 %v715, 1
    %v738 = vpop.permute.xlu0 %737
    %739 = vrot.lane.b32.xlu0 %v716, 1
    %v740 = vpop.permute.xlu0 %739
    %v741 = vadd.f32 %v726, %v734
    %v742 = vadd.f32 %v728, %v736
    %v743 = vadd.f32 %v730, %v738
    %v744 = vadd.f32 %v732, %v740
    %v745 = vadd.f32 %v717, %v721
    %v746 = vadd.f32 %v718, %v722
    %v747 = vadd.f32 %v719, %v723
    %v748 = vadd.f32 %v720, %v724
    %v749 = vadd.f32 %v741, %v745
    %v750 = vadd.f32 %v742, %v746
    %v751 = vadd.f32 %v743, %v747
    %v752 = vadd.f32 %v744, %v748
    %v753 = vmul.f32 %v749, %v38
    %v754 = vmul.f32 %v750, %v38
    %v755 = vmul.f32 %v751, %v38
    %v756 = vmul.f32 %v752, %v38
    %757 = vst [vmem:[#allocation2 + $0x8] sm:$0xff] %v753
    %758 = vst [vmem:[#allocation2 + $0x10] sm:$0xff] %v754
    %759 = vst [vmem:[#allocation2 + $0x18] sm:$0xff] %v755
    %760 = vst [vmem:[#allocation2 + $0x20] sm:$0x3f] %v756
    %v761 = vld [vmem:[#allocation2 + $0x8] sm:$0xff]
    %v762 = vld [vmem:[#allocation2 + $0x10] sm:$0xff]
    %v763 = vld [vmem:[#allocation2 + $0x18] sm:$0xff]
    %v764 = vld [vmem:[#allocation2 + $0x20] sm:$0x3f]
    %v765 = vld [vmem:[#allocation2 + $0x7] sm:$0xff]
    %v766 = vld [vmem:[#allocation2 + $0xf] sm:$0xff]
    %v767 = vld [vmem:[#allocation2 + $0x17] sm:$0xff]
    %v768 = vld [vmem:[#allocation2 + $0x1f] sm:$0x3f]
    %v769 = vld [vmem:[#allocation2 + $0x9] sm:$0xff]
    %v770 = vld [vmem:[#allocation2 + $0x11] sm:$0xff]
    %v771 = vld [vmem:[#allocation2 + $0x19] sm:$0xff]
    %v772 = vld [vmem:[#allocation2 + $0x21] sm:$0x3f]
    %773 = vrot.lane.b32.xlu0 %v761, 127
    %v774 = vpop.permute.xlu0 %773
    %775 = vrot.lane.b32.xlu0 %v762, 127
    %v776 = vpop.permute.xlu0 %775
    %777 = vrot.lane.b32.xlu0 %v763, 127
    %v778 = vpop.permute.xlu0 %777
    %779 = vrot.lane.b32.xlu0 %v764, 127
    %v780 = vpop.permute.xlu0 %779
    %781 = vrot.lane.b32.xlu0 %v761, 1
    %v782 = vpop.permute.xlu0 %781
    %783 = vrot.lane.b32.xlu0 %v762, 1
    %v784 = vpop.permute.xlu0 %783
    %785 = vrot.lane.b32.xlu0 %v763, 1
    %v786 = vpop.permute.xlu0 %785
    %787 = vrot.lane.b32.xlu0 %v764, 1
    %v788 = vpop.permute.xlu0 %787
    %v789 = vadd.f32 %v774, %v782
    %v790 = vadd.f32 %v776, %v784
    %v791 = vadd.f32 %v778, %v786
    %v792 = vadd.f32 %v780, %v788
    %v793 = vadd.f32 %v765, %v769
    %v794 = vadd.f32 %v766, %v770
    %v795 = vadd.f32 %v767, %v771
    %v796 = vadd.f32 %v768, %v772
    %v797 = vadd.f32 %v789, %v793
    %v798 = vadd.f32 %v790, %v794
    %v799 = vadd.f32 %v791, %v795
    %v800 = vadd.f32 %v792, %v796
    %v801 = vmul.f32 %v797, %v38
    %v802 = vmul.f32 %v798, %v38
    %v803 = vmul.f32 %v799, %v38
    %v804 = vmul.f32 %v800, %v38
    %805 = vst [vmem:[#allocation2 + $0x8] sm:$0xff] %v801
    %806 = vst [vmem:[#allocation2 + $0x10] sm:$0xff] %v802
    %807 = vst [vmem:[#allocation2 + $0x18] sm:$0xff] %v803
    %808 = vst [vmem:[#allocation2 + $0x20] sm:$0x3f] %v804
    %v809 = vld [vmem:[#allocation2 + $0x8] sm:$0xff]
    %v810 = vld [vmem:[#allocation2 + $0x10] sm:$0xff]
    %v811 = vld [vmem:[#allocation2 + $0x18] sm:$0xff]
    %v812 = vld [vmem:[#allocation2 + $0x20] sm:$0x3f]
    %v813 = vld [vmem:[#allocation2 + $0x7] sm:$0xff]
    %v814 = vld [vmem:[#allocation2 + $0xf] sm:$0xff]
    %v815 = vld [vmem:[#allocation2 + $0x17] sm:$0xff]
    %v816 = vld [vmem:[#allocation2 + $0x1f] sm:$0x3f]
    %v817 = vld [vmem:[#allocation2 + $0x9] sm:$0xff]
    %v818 = vld [vmem:[#allocation2 + $0x11] sm:$0xff]
    %v819 = vld [vmem:[#allocation2 + $0x19] sm:$0xff]
    %v820 = vld [vmem:[#allocation2 + $0x21] sm:$0x3f]
    %821 = vrot.lane.b32.xlu0 %v809, 127
    %v822 = vpop.permute.xlu0 %821
    %823 = vrot.lane.b32.xlu0 %v810, 127
    %v824 = vpop.permute.xlu0 %823
    %825 = vrot.lane.b32.xlu0 %v811, 127
    %v826 = vpop.permute.xlu0 %825
    %827 = vrot.lane.b32.xlu0 %v812, 127
    %v828 = vpop.permute.xlu0 %827
    %829 = vrot.lane.b32.xlu0 %v809, 1
    %v830 = vpop.permute.xlu0 %829
    %831 = vrot.lane.b32.xlu0 %v810, 1
    %v832 = vpop.permute.xlu0 %831
    %833 = vrot.lane.b32.xlu0 %v811, 1
    %v834 = vpop.permute.xlu0 %833
    %835 = vrot.lane.b32.xlu0 %v812, 1
    %v836 = vpop.permute.xlu0 %835
    %v837 = vadd.f32 %v822, %v830
    %v838 = vadd.f32 %v824, %v832
    %v839 = vadd.f32 %v826, %v834
    %v840 = vadd.f32 %v828, %v836
    %v841 = vadd.f32 %v813, %v817
    %v842 = vadd.f32 %v814, %v818
    %v843 = vadd.f32 %v815, %v819
    %v844 = vadd.f32 %v816, %v820
    %v845 = vadd.f32 %v837, %v841
    %v846 = vadd.f32 %v838, %v842
    %v847 = vadd.f32 %v839, %v843
    %v848 = vadd.f32 %v840, %v844
    %v849 = vmul.f32 %v845, %v38
    %v850 = vmul.f32 %v846, %v38
    %v851 = vmul.f32 %v847, %v38
    %v852 = vmul.f32 %v848, %v38
    %853 = vst [vmem:[#allocation2 + $0x8] sm:$0xff] %v849
    %854 = vst [vmem:[#allocation2 + $0x10] sm:$0xff] %v850
    %855 = vst [vmem:[#allocation2 + $0x18] sm:$0xff] %v851
    %856 = vst [vmem:[#allocation2 + $0x20] sm:$0x3f] %v852
    %v857 = vld [vmem:[#allocation2 + $0x8] sm:$0xff]
    %v858 = vld [vmem:[#allocation2 + $0x10] sm:$0xff]
    %v859 = vld [vmem:[#allocation2 + $0x18] sm:$0xff]
    %v860 = vld [vmem:[#allocation2 + $0x20] sm:$0x3f]
    %v861 = vld [vmem:[#allocation2 + $0x7] sm:$0xff]
    %v862 = vld [vmem:[#allocation2 + $0xf] sm:$0xff]
    %v863 = vld [vmem:[#allocation2 + $0x17] sm:$0xff]
    %v864 = vld [vmem:[#allocation2 + $0x1f] sm:$0x3f]
    %v865 = vld [vmem:[#allocation2 + $0x9] sm:$0xff]
    %v866 = vld [vmem:[#allocation2 + $0x11] sm:$0xff]
    %v867 = vld [vmem:[#allocation2 + $0x19] sm:$0xff]
    %v868 = vld [vmem:[#allocation2 + $0x21] sm:$0x3f]
    %869 = vrot.lane.b32.xlu0 %v857, 127
    %v870 = vpop.permute.xlu0 %869
    %871 = vrot.lane.b32.xlu0 %v858, 127
    %v872 = vpop.permute.xlu0 %871
    %873 = vrot.lane.b32.xlu0 %v859, 127
    %v874 = vpop.permute.xlu0 %873
    %875 = vrot.lane.b32.xlu0 %v860, 127
    %v876 = vpop.permute.xlu0 %875
    %877 = vrot.lane.b32.xlu0 %v857, 1
    %v878 = vpop.permute.xlu0 %877
    %879 = vrot.lane.b32.xlu0 %v858, 1
    %v880 = vpop.permute.xlu0 %879
    %881 = vrot.lane.b32.xlu0 %v859, 1
    %v882 = vpop.permute.xlu0 %881
    %883 = vrot.lane.b32.xlu0 %v860, 1
    %v884 = vpop.permute.xlu0 %883
    %v885 = vadd.f32 %v870, %v878
    %v886 = vadd.f32 %v872, %v880
    %v887 = vadd.f32 %v874, %v882
    %v888 = vadd.f32 %v876, %v884
    %v889 = vadd.f32 %v861, %v865
    %v890 = vadd.f32 %v862, %v866
    %v891 = vadd.f32 %v863, %v867
    %v892 = vadd.f32 %v864, %v868
    %v893 = vadd.f32 %v885, %v889
    %v894 = vadd.f32 %v886, %v890
    %v895 = vadd.f32 %v887, %v891
    %v896 = vadd.f32 %v888, %v892
    %v897 = vmul.f32 %v893, %v38
    %v898 = vmul.f32 %v894, %v38
    %v899 = vmul.f32 %v895, %v38
    %v900 = vmul.f32 %v896, %v38
    %901 = vst [vmem:[#allocation2 + $0x8] sm:$0xff] %v897
    %902 = vst [vmem:[#allocation2 + $0x10] sm:$0xff] %v898
    %903 = vst [vmem:[#allocation2 + $0x18] sm:$0xff] %v899
    %904 = vst [vmem:[#allocation2 + $0x20] sm:$0x3f] %v900
    %v905 = vld [vmem:[#allocation2 + $0x8] sm:$0xff]
    %v906 = vld [vmem:[#allocation2 + $0x10] sm:$0xff]
    %v907 = vld [vmem:[#allocation2 + $0x18] sm:$0xff]
    %v908 = vld [vmem:[#allocation2 + $0x20] sm:$0x3f]
    %v909 = vld [vmem:[#allocation2 + $0x7] sm:$0xff]
    %v910 = vld [vmem:[#allocation2 + $0xf] sm:$0xff]
    %v911 = vld [vmem:[#allocation2 + $0x17] sm:$0xff]
    %v912 = vld [vmem:[#allocation2 + $0x1f] sm:$0x3f]
    %v913 = vld [vmem:[#allocation2 + $0x9] sm:$0xff]
    %v914 = vld [vmem:[#allocation2 + $0x11] sm:$0xff]
    %v915 = vld [vmem:[#allocation2 + $0x19] sm:$0xff]
    %v916 = vld [vmem:[#allocation2 + $0x21] sm:$0x3f]
    %917 = vrot.lane.b32.xlu0 %v905, 127
    %v918 = vpop.permute.xlu0 %917
    %919 = vrot.lane.b32.xlu0 %v906, 127
    %v920 = vpop.permute.xlu0 %919
    %921 = vrot.lane.b32.xlu0 %v907, 127
    %v922 = vpop.permute.xlu0 %921
    %923 = vrot.lane.b32.xlu0 %v908, 127
    %v924 = vpop.permute.xlu0 %923
    %925 = vrot.lane.b32.xlu0 %v905, 1
    %v926 = vpop.permute.xlu0 %925
    %927 = vrot.lane.b32.xlu0 %v906, 1
    %v928 = vpop.permute.xlu0 %927
    %929 = vrot.lane.b32.xlu0 %v907, 1
    %v930 = vpop.permute.xlu0 %929
    %931 = vrot.lane.b32.xlu0 %v908, 1
    %v932 = vpop.permute.xlu0 %931
    %v933 = vadd.f32 %v918, %v926
    %v934 = vadd.f32 %v920, %v928
    %v935 = vadd.f32 %v922, %v930
    %v936 = vadd.f32 %v924, %v932
    %v937 = vadd.f32 %v909, %v913
    %v938 = vadd.f32 %v910, %v914
    %v939 = vadd.f32 %v911, %v915
    %v940 = vadd.f32 %v912, %v916
    %v941 = vadd.f32 %v933, %v937
    %v942 = vadd.f32 %v934, %v938
    %v943 = vadd.f32 %v935, %v939
    %v944 = vadd.f32 %v936, %v940
    %v945 = vmul.f32 %v941, %v38
    %v946 = vmul.f32 %v942, %v38
    %v947 = vmul.f32 %v943, %v38
    %v948 = vmul.f32 %v944, %v38
    %949 = vst [vmem:[#allocation2 + $0x8] sm:$0xff] %v945
    %950 = vst [vmem:[#allocation2 + $0x10] sm:$0xff] %v946
    %951 = vst [vmem:[#allocation2 + $0x18] sm:$0xff] %v947
    %952 = vst [vmem:[#allocation2 + $0x20] sm:$0x3f] %v948
    %v953 = vld [vmem:[#allocation2 + $0x8] sm:$0xff]
    %v954 = vld [vmem:[#allocation2 + $0x10] sm:$0xff]
    %v955 = vld [vmem:[#allocation2 + $0x18] sm:$0xff]
    %v956 = vld [vmem:[#allocation2 + $0x20] sm:$0x3f]
    %v957 = vld [vmem:[#allocation2 + $0x7] sm:$0xff]
    %v958 = vld [vmem:[#allocation2 + $0xf] sm:$0xff]
    %v959 = vld [vmem:[#allocation2 + $0x17] sm:$0xff]
    %v960 = vld [vmem:[#allocation2 + $0x1f] sm:$0x3f]
    %v961 = vld [vmem:[#allocation2 + $0x9] sm:$0xff]
    %v962 = vld [vmem:[#allocation2 + $0x11] sm:$0xff]
    %v963 = vld [vmem:[#allocation2 + $0x19] sm:$0xff]
    %v964 = vld [vmem:[#allocation2 + $0x21] sm:$0x3f]
    %965 = vrot.lane.b32.xlu0 %v953, 127
    %v966 = vpop.permute.xlu0 %965
    %967 = vrot.lane.b32.xlu0 %v954, 127
    %v968 = vpop.permute.xlu0 %967
    %969 = vrot.lane.b32.xlu0 %v955, 127
    %v970 = vpop.permute.xlu0 %969
    %971 = vrot.lane.b32.xlu0 %v956, 127
    %v972 = vpop.permute.xlu0 %971
    %973 = vrot.lane.b32.xlu0 %v953, 1
    %v974 = vpop.permute.xlu0 %973
    %975 = vrot.lane.b32.xlu0 %v954, 1
    %v976 = vpop.permute.xlu0 %975
    %977 = vrot.lane.b32.xlu0 %v955, 1
    %v978 = vpop.permute.xlu0 %977
    %979 = vrot.lane.b32.xlu0 %v956, 1
    %v980 = vpop.permute.xlu0 %979
    %v981 = vadd.f32 %v966, %v974
    %v982 = vadd.f32 %v968, %v976
    %v983 = vadd.f32 %v970, %v978
    %v984 = vadd.f32 %v972, %v980
    %v985 = vadd.f32 %v957, %v961
    %v986 = vadd.f32 %v958, %v962
    %v987 = vadd.f32 %v959, %v963
    %v988 = vadd.f32 %v960, %v964
    %v989 = vadd.f32 %v981, %v985
    %v990 = vadd.f32 %v982, %v986
    %v991 = vadd.f32 %v983, %v987
    %v992 = vadd.f32 %v984, %v988
    %v993 = vmul.f32 %v989, %v38
    %v994 = vmul.f32 %v990, %v38
    %v995 = vmul.f32 %v991, %v38
    %v996 = vmul.f32 %v992, %v38
    %997 = vst [vmem:[#allocation2 + $0x8] sm:$0xff] %v993
    %998 = vst [vmem:[#allocation2 + $0x10] sm:$0xff] %v994
    %999 = vst [vmem:[#allocation2 + $0x18] sm:$0xff] %v995
    %1000 = vst [vmem:[#allocation2 + $0x20] sm:$0x3f] %v996
    %v1001 = vld [vmem:[#allocation2 + $0x7] sm:$0xff]
    %v1002 = vld [vmem:[#allocation2 + $0xf] sm:$0xff]
    %v1003 = vld [vmem:[#allocation2 + $0x17] sm:$0xff]
    %v1004 = vld [vmem:[#allocation2 + $0x1f] sm:$0xff]
    %1005 = vst [vmem:[#allocation6] sm:$0xff] %v1001
    %1006 = vst [vmem:[#allocation6 + $0x8] sm:$0xff] %v1002
    %1007 = vst [vmem:[#allocation6 + $0x10] sm:$0xff] %v1003
    %1008 = vst [vmem:[#allocation6 + $0x18] sm:$0xff] %v1004
    // Predicated region
    $region10: #{tpu_custom_call.1} parent=1 // pred_check
      _
    $region11: #{tpu_custom_call.1} parent=1 // pred_check_branch
      %1010 = sbr.rel (0) target = $region13
    $region12: #{tpu_custom_call.1} parent=1 // pred_region
      %1012 = vsyncadd [#allocation5], 0
      %s1013 = sshll.u32 [#allocation6], 4
      %s1014 = int_to_ptr.vmem [resolvable:$true] %s1013
      %s1015 = sshll.u32 %s1, 4
      %s1016 = int_to_ptr.hbm [resolvable:$true] %s1015
      %1021 = dma.vmem_to_hbm [thread:$0]  %s1014, 512, %s1016, [#allocation5], 128, 128, 8
    $region13: #{tpu_custom_call.1} parent=1 // pred_fallthru
      _
    // Predicated region
    $region14: #{tpu_custom_call.1} parent=1 // pred_check
      _
    $region15: #{tpu_custom_call.1} parent=1 // pred_check_branch
      %1023 = sbr.rel (0) target = $region17
    $region16: #{tpu_custom_call.1} parent=1 // pred_region
      %1025 = dma.done [#allocation5], 512
    $region17: #{tpu_custom_call.1} parent=1 // pred_fallthru
      _
    %1026 = vsyncpa [#allocation4], 1
    %1027 = vsyncpa [#allocation5], 1

</llo_original>
